<compile_context>
chip_gen: v6e
topology: v6e:2x2x1
jax: 0.10.0
libtpu: 0.0.40
codegen_flags: <defaults>
</compile_context>

<pallas_src>
import numpy as np
import jax
import jax.numpy as jnp
from jax.experimental import pallas as pl
from jax.experimental.pallas import tpu as pltpu

N_QUBITS = 4            # module default n_qubits
DIM = 2 ** N_QUBITS     # 16 basis states
SCALE = 2               # module default k

_SUB = 8                # sublanes per vreg
_LANE = 128             # lanes per vreg
_CHUNK = _SUB * _LANE   # pixels per (8,128) chunk
_MAX_CPB = 128          # chunks per block cap -> 9 arrays * 512 KiB * 2 bufs ~= 9 MiB


def _cz_chain_signs(n_qubits):
    """Combined sign per basis state of the CZ chain CZ(0,1) CZ(1,2) ... CZ(n-2,n-1)."""
    signs = []
    for s in range(2 ** n_qubits):
        flips = sum(1 for y in range(n_qubits - 1)
                    if ((s >> y) & 1) and ((s >> (y + 1)) & 1))
        signs.append(-1.0 if flips % 2 else 1.0)
    return signs


_CZ_SIGNS = _cz_chain_signs(N_QUBITS)


def _signed_lincomb(p0, p1, sgn0, sgn1, coef_a, coef_b):
    """sgn0*A*p0 + sgn1*B*p1 where A = coef_a(+1), B = coef_b(+1).

    Always 2 vmul + 1 vadd/vsub.  The static CZ signs are folded by picking the
    add/sub variant (and, only when both signs are negative, a pre-negated
    coefficient splat) at trace time, so no extra per-element ops are emitted.
    """
    if sgn0 > 0 and sgn1 > 0:
        return coef_a(1) * p0 + coef_b(1) * p1
    if sgn0 > 0 and sgn1 < 0:
        return coef_a(1) * p0 - coef_b(1) * p1
    if sgn0 < 0 and sgn1 > 0:
        return coef_b(1) * p1 - coef_a(1) * p0
    return coef_a(-1) * p0 - coef_b(1) * p1          # both negative


def quanv_kernel(cw_ref, sw_ref, c0, s0, c1, s1, c2, s2, c3, s3, o_ref):
    """Per-pixel 4-qubit circuit simulation over one block of (8,128) chunks.

    cw_ref/sw_ref : SMEM (n_layers, 4) f32, cos/sin of half the trainable RY
                    angles (row 0 is unused -- it is folded into the encoding).
    c0..s3        : VMEM (cpb, 8, 128) f32, cos/sin of the per-wire half-angles
                    (data angle + layer-0 weight already combined).
    o_ref         : VMEM (cpb, 8, 128) f32, max basis-state probability per pixel.

    Bit convention: wire w <-> bit w of the state index.  The result is max over
    all 16 probabilities (n_a_qubits = 0), so the basis-labelling permutation vs
    PennyLane's MSB convention is irrelevant.
    """
    n_layers = cw_ref.shape[0]     # == in_c (weights.shape[0])
    cpb = o_ref.shape[0]

    @pl.loop(0, cpb)
    def _(idx):
        # Per-chunk coefficient splats: each (layer, wire, cos/sin, sign) value
        # is materialized exactly once per chunk (memoized), so the RY
        # butterflies never re-broadcast a scalar per multiply.
        splat = {}

        def coef(layer, wire, kind, sign):
            key = (layer, wire, kind, sign)
            v = splat.get(key)
            if v is None:
                sc = (cw_ref if kind == 0 else sw_ref)[layer, wire]
                if sign < 0:
                    sc = -sc
                v = jnp.full((_SUB, _LANE), sc, dtype=jnp.float32)
                splat[key] = v
            return v

        # Product state RY(a0+w00)|0> (x) ... (x) RY(a3+w03)|0> from the
        # wrapper-precomputed cos/sin planes, built as a pair tree (24 muls).
        ch = (c0[idx], c1[idx], c2[idx], c3[idx])
        sh = (s0[idx], s1[idx], s2[idx], s3[idx])
        p01 = (ch[0] * ch[1], sh[0] * ch[1], ch[0] * sh[1], sh[0] * sh[1])  # b0 + 2*b1
        p23 = (ch[2] * ch[3], sh[2] * ch[3], ch[2] * sh[3], sh[2] * sh[3])  # b2 + 2*b3
        psi = [p01[st & 3] * p23[st >> 2] for st in range(DIM)]

        # Layer 0's RY gates are absorbed into the encoding above; its CZ-chain
        # sign pattern is "pending" and folded into the next layer's wire-0
        # butterfly.  If there is no next layer it is the final CZ -> dropped.
        pending = _CZ_SIGNS if n_layers > 1 else None

        for layer in range(1, n_layers):
            for w in range(N_QUBITS):
                signs = pending if w == 0 else None
                get_c = lambda sign, _l=layer, _w=w: coef(_l, _w, 0, sign)
                get_s = lambda sign, _l=layer, _w=w: coef(_l, _w, 1, sign)
                new_psi = list(psi)
                for st0 in range(DIM):
                    if (st0 >> w) & 1:
                        continue
                    st1 = st0 | (1 << w)
                    d0 = signs[st0] if signs is not None else 1.0
                    d1 = signs[st1] if signs is not None else 1.0
                    p0, p1 = psi[st0], psi[st1]
                    # new0 = d0*c*p0 - d1*s*p1 ; new1 = d0*s*p0 + d1*c*p1
                    new_psi[st0] = _signed_lincomb(p0, p1, d0, -d1, get_c, get_s)
                    new_psi[st1] = _signed_lincomb(p0, p1, d0, d1, get_s, get_c)
                psi = new_psi
            # This layer's CZ chain becomes pending for the next layer's wire-0
            # butterfly; after the LAST layer it is dropped (sign-invariant probs).
            pending = _CZ_SIGNS if layer < n_layers - 1 else None

        # Probabilities and max over the 16 basis states (balanced tree, depth 5).
        m = [p * p for p in psi]
        while len(m) > 1:
            m = [jnp.maximum(m[i], m[i + 1]) for i in range(0, len(m), 2)]
        o_ref[idx] = m[0]


def quanv_pallas(planes, cw, sw):
    """Run the quanvolution kernel over 8 flat 1-D cos/sin planes of length n."""
    n = planes[0].shape[0]
    n_chunks = -(-n // _CHUNK)
    if n_chunks <= 1:
        grid, cpb = 1, 1
    else:
        # Even grid (>=2) so v7x's two TensorCores split the "parallel" axis
        # evenly; cpb as large as possible (<= _MAX_CPB) so per-grid-step
        # pipeline overhead stays a few % (the kernel is VALU-bound).
        grid = 2 * (-(-n_chunks // (2 * _MAX_CPB)))
        cpb = -(-n_chunks // grid)
    padded = grid * cpb * _CHUNK
    pad = padded - n
    if pad:
        planes = [jnp.pad(p, (0, pad)) for p in planes]
    shape3 = (grid * cpb, _SUB, _LANE)
    planes = [p.reshape(shape3) for p in planes]

    blk = pl.BlockSpec((cpb, _SUB, _LANE), lambda i, cw_s, sw_s: (i, 0, 0))
    out = pl.pallas_call(
        quanv_kernel,
        out_shape=jax.ShapeDtypeStruct(shape3, jnp.float32),
        grid_spec=pltpu.PrefetchScalarGridSpec(
            num_scalar_prefetch=2,          # cw, sw -> SMEM
            grid=(grid,),
            in_specs=[blk] * 8,
            out_specs=blk,
        ),
        compiler_params=pltpu.CompilerParams(dimension_semantics=("parallel",)),
    )(cw, sw, *planes)
    return out.reshape(-1)[:n]


# -------- plain-JAX glue: bilinear upsample (PyTorch align_corners=False) ----------
def _upsample_axis_indices(size, k, shift):
    """Source indices/weights of the bilinear upsample evaluated at output index
    o+shift, clamped to the valid output range (edge-clamped 2x2 patch neighbor)."""
    o = np.minimum(np.arange(size * k, dtype=np.int64) + shift, size * k - 1)
    src = (o.astype(np.float64) + 0.5) / k - 0.5
    src = np.maximum(src, 0.0)
    i0 = np.minimum(np.floor(src).astype(np.int64), size - 1)
    i1 = np.minimum(i0 + 1, size - 1)
    lam = (src - i0).astype(np.float32)
    return i0, i1, lam


def _shifted_bilinear_upsample(x, k, di, dj):
    """Value of the k-x bilinear upsample of x (NCHW) at output pixel
    (i+di, j+dj), edge-clamped -- gathered directly from the small input."""
    h0, h1, lh = _upsample_axis_indices(x.shape[2], k, di)
    w0, w1, lw = _upsample_axis_indices(x.shape[3], k, dj)
    lh = jnp.asarray(lh)[None, None, :, None]
    lw = jnp.asarray(lw)[None, None, None, :]
    xh = x[:, :, h0, :] * (1.0 - lh) + x[:, :, h1, :] * lh
    return xh[:, :, :, w0] * (1.0 - lw) + xh[:, :, :, w1] * lw


def qsrgan_forward(x, weights, scale_factor=SCALE):
    """Equivalent of QSRGAN.forward(input, mode='bilinear')."""
    # TODO(synk): upsample + trig-plane construction kept in plain JAX (gather/
    # elementwise glue); the hot per-pixel circuit simulation is the Pallas kernel.
    x = x.astype(jnp.float32)
    weights = weights.astype(jnp.float32)
    B, C, H, W = x.shape
    Hu, Wu = H * scale_factor, W * scale_factor

    # Per-wire half-angle cos/sin planes.  Wire order matches _identity():
    # (i,j), (i,j+1), (i+1,j), (i+1,j+1), edge-clamped.  Layer-0 RY is absorbed:
    # RY(weights[0][w]) . RY(a) = RY(a + weights[0][w]).
    planes = []
    for wire, (di, dj) in enumerate(((0, 0), (0, 1), (1, 0), (1, 1))):
        half = (0.5 * _shifted_bilinear_upsample(x, scale_factor, di, dj)
                + 0.5 * weights[0, wire])
        planes.append(jnp.cos(half).reshape(-1))
        planes.append(jnp.sin(half).reshape(-1))

    # cos/sin of half the trainable angles (row 0 unused in the kernel).
    cw = jnp.cos(0.5 * weights)
    sw = jnp.sin(0.5 * weights)

    out = quanv_pallas(planes, cw, sw)
    return out.reshape(B, C, Hu, Wu)


# -------- independent dense (Kronecker-product) statevector reference --------------
def _reference_quanv(xu, weights):
    xu = np.asarray(xu, dtype=np.float64)
    weights = np.asarray(weights, dtype=np.float64)
    B, C, Hu, Wu = xu.shape
    out = np.zeros_like(xu)

    def ry(theta):
        c, s = np.cos(theta / 2.0), np.sin(theta / 2.0)
        return np.array([[c, -s], [s, c]])

    def full_1q(U, w):
        return np.kron(np.eye(2 ** (N_QUBITS - 1 - w)), np.kron(U, np.eye(2 ** w)))

    def cz_diag(a, b):
        d = np.ones(DIM)
        for s in range(DIM):
            if ((s >> a) & 1) and ((s >> b) & 1):
                d[s] = -1.0
        return d

    for b in range(B):
        for c in range(C):
            for i in range(Hu):
                for j in range(Wu):
                    i1, j1 = min(i + 1, Hu - 1), min(j + 1, Wu - 1)
                    angles = [xu[b, c, i, j], xu[b, c, i, j1],
                              xu[b, c, i1, j], xu[b, c, i1, j1]]
                    psi = np.zeros(DIM)
                    psi[0] = 1.0
                    for w in range(N_QUBITS):
                        psi = full_1q(ry(angles[w]), w) @ psi
                    for layer in range(weights.shape[0]):
                        for w in range(N_QUBITS):
                            psi = full_1q(ry(weights[layer, w]), w) @ psi
                        for y in range(N_QUBITS - 1):
                            psi = cz_diag(y, y + 1) * psi
                    out[b, c, i, j] = np.max(psi ** 2)
    return out


if __name__ == "__main__":
    key = jax.random.PRNGKey(0)
    k1, k2 = jax.random.split(key)

    # Small shapes: batch=2, in_c=3 (module default), 8x8 spatial -> 16x16 output.
    B, C, H, W = 2, 3, 8, 8
    x = jax.random.normal(k1, (B, C, H, W), dtype=jnp.float32)
    # torch.rand((in_c, n_qubits)) analogue, deterministic.
    conv1_weights = jax.random.uniform(k2, (C, N_QUBITS), dtype=jnp.float32)

    out = jax.jit(qsrgan_forward)(x, conv1_weights)
    out = jax.block_until_ready(out)
    assert out.shape == (B, C, SCALE * H, SCALE * W)
    assert out.dtype == jnp.float32

    # Cross-check the kernel against a dense statevector reference (f64 numpy).
    xu = _shifted_bilinear_upsample(x.astype(jnp.float32), SCALE, 0, 0)
    ref = _reference_quanv(np.asarray(xu), np.asarray(conv1_weights))
    np.testing.assert_allclose(np.asarray(out), ref, atol=1e-4, rtol=1e-4)

    print("KERNEL_OK")
</pallas_src>

<mosaic_0001>
module attributes {stable_mosaic.version = 11 : i64} {
  func.func @quanv_kernel(%arg0: i32, %arg1: memref<3x4xf32, #tpu.memory_space<smem>>, %arg2: memref<3x4xf32, #tpu.memory_space<smem>>, %arg3: memref<1x8x128xf32, #tpu.memory_space<vmem>>, %arg4: memref<1x8x128xf32, #tpu.memory_space<vmem>>, %arg5: memref<1x8x128xf32, #tpu.memory_space<vmem>>, %arg6: memref<1x8x128xf32, #tpu.memory_space<vmem>>, %arg7: memref<1x8x128xf32, #tpu.memory_space<vmem>>, %arg8: memref<1x8x128xf32, #tpu.memory_space<vmem>>, %arg9: memref<1x8x128xf32, #tpu.memory_space<vmem>>, %arg10: memref<1x8x128xf32, #tpu.memory_space<vmem>>, %arg11: memref<1x8x128xf32, #tpu.memory_space<vmem>>) attributes {dimension_semantics = [#tpu.dimension_semantics<parallel>], iteration_bounds = array<i64: 2>, scalar_prefetch = 2 : i64, scratch_operands = 0 : i64, tpu.core_type = #tpu.core_type<tc>, window_params = [{transform_indices = @transform_0, window_bounds = array<i64: 1, 8, 128>}, {transform_indices = @transform_1, window_bounds = array<i64: 1, 8, 128>}, {transform_indices = @transform_2, window_bounds = array<i64: 1, 8, 128>}, {transform_indices = @transform_3, window_bounds = array<i64: 1, 8, 128>}, {transform_indices = @transform_4, window_bounds = array<i64: 1, 8, 128>}, {transform_indices = @transform_5, window_bounds = array<i64: 1, 8, 128>}, {transform_indices = @transform_6, window_bounds = array<i64: 1, 8, 128>}, {transform_indices = @transform_7, window_bounds = array<i64: 1, 8, 128>}, {transform_indices = @transform_8, window_bounds = array<i64: 1, 8, 128>}]} {
    %c0_i32 = arith.constant 0 : i32
    %c1_i32 = arith.constant 1 : i32
    %0 = arith.muli %c0_i32, %c1_i32 : i32
    %c0_i32_0 = arith.constant 0 : i32
    %1 = arith.addi %c0_i32_0, %0 : i32
    %2 = arith.index_cast %1 : i32 to index
    %c0 = arith.constant 0 : index
    %c0_1 = arith.constant 0 : index
    %3 = vector.load %arg3[%2, %c0, %c0_1] : memref<1x8x128xf32, #tpu.memory_space<vmem>>, vector<1x8x128xf32>
    %4 = vector.shape_cast %3 : vector<1x8x128xf32> to vector<8x128xf32>
    %5 = arith.index_cast %1 : i32 to index
    %c0_2 = arith.constant 0 : index
    %c0_3 = arith.constant 0 : index
    %6 = vector.load %arg5[%5, %c0_2, %c0_3] : memref<1x8x128xf32, #tpu.memory_space<vmem>>, vector<1x8x128xf32>
    %7 = vector.shape_cast %6 : vector<1x8x128xf32> to vector<8x128xf32>
    %8 = arith.index_cast %1 : i32 to index
    %c0_4 = arith.constant 0 : index
    %c0_5 = arith.constant 0 : index
    %9 = vector.load %arg7[%8, %c0_4, %c0_5] : memref<1x8x128xf32, #tpu.memory_space<vmem>>, vector<1x8x128xf32>
    %10 = vector.shape_cast %9 : vector<1x8x128xf32> to vector<8x128xf32>
    %11 = arith.index_cast %1 : i32 to index
    %c0_6 = arith.constant 0 : index
    %c0_7 = arith.constant 0 : index
    %12 = vector.load %arg9[%11, %c0_6, %c0_7] : memref<1x8x128xf32, #tpu.memory_space<vmem>>, vector<1x8x128xf32>
    %13 = vector.shape_cast %12 : vector<1x8x128xf32> to vector<8x128xf32>
    %14 = arith.index_cast %1 : i32 to index
    %c0_8 = arith.constant 0 : index
    %c0_9 = arith.constant 0 : index
    %15 = vector.load %arg4[%14, %c0_8, %c0_9] : memref<1x8x128xf32, #tpu.memory_space<vmem>>, vector<1x8x128xf32>
    %16 = vector.shape_cast %15 : vector<1x8x128xf32> to vector<8x128xf32>
    %17 = arith.index_cast %1 : i32 to index
    %c0_10 = arith.constant 0 : index
    %c0_11 = arith.constant 0 : index
    %18 = vector.load %arg6[%17, %c0_10, %c0_11] : memref<1x8x128xf32, #tpu.memory_space<vmem>>, vector<1x8x128xf32>
    %19 = vector.shape_cast %18 : vector<1x8x128xf32> to vector<8x128xf32>
    %20 = arith.index_cast %1 : i32 to index
    %c0_12 = arith.constant 0 : index
    %c0_13 = arith.constant 0 : index
    %21 = vector.load %arg8[%20, %c0_12, %c0_13] : memref<1x8x128xf32, #tpu.memory_space<vmem>>, vector<1x8x128xf32>
    %22 = vector.shape_cast %21 : vector<1x8x128xf32> to vector<8x128xf32>
    %23 = arith.index_cast %1 : i32 to index
    %c0_14 = arith.constant 0 : index
    %c0_15 = arith.constant 0 : index
    %24 = vector.load %arg10[%23, %c0_14, %c0_15] : memref<1x8x128xf32, #tpu.memory_space<vmem>>, vector<1x8x128xf32>
    %25 = vector.shape_cast %24 : vector<1x8x128xf32> to vector<8x128xf32>
    %26 = arith.mulf %4, %7 : vector<8x128xf32>
    %27 = arith.mulf %16, %7 : vector<8x128xf32>
    %28 = arith.mulf %4, %19 : vector<8x128xf32>
    %29 = arith.mulf %16, %19 : vector<8x128xf32>
    %30 = arith.mulf %10, %13 : vector<8x128xf32>
    %31 = arith.mulf %22, %13 : vector<8x128xf32>
    %32 = arith.mulf %10, %25 : vector<8x128xf32>
    %33 = arith.mulf %22, %25 : vector<8x128xf32>
    %34 = arith.mulf %26, %30 : vector<8x128xf32>
    %35 = arith.mulf %27, %30 : vector<8x128xf32>
    %36 = arith.mulf %28, %30 : vector<8x128xf32>
    %37 = arith.mulf %29, %30 : vector<8x128xf32>
    %38 = arith.mulf %26, %31 : vector<8x128xf32>
    %39 = arith.mulf %27, %31 : vector<8x128xf32>
    %40 = arith.mulf %28, %31 : vector<8x128xf32>
    %41 = arith.mulf %29, %31 : vector<8x128xf32>
    %42 = arith.mulf %26, %32 : vector<8x128xf32>
    %43 = arith.mulf %27, %32 : vector<8x128xf32>
    %44 = arith.mulf %28, %32 : vector<8x128xf32>
    %45 = arith.mulf %29, %32 : vector<8x128xf32>
    %46 = arith.mulf %26, %33 : vector<8x128xf32>
    %47 = arith.mulf %27, %33 : vector<8x128xf32>
    %48 = arith.mulf %28, %33 : vector<8x128xf32>
    %49 = arith.mulf %29, %33 : vector<8x128xf32>
    %c1 = arith.constant 1 : index
    %c0_16 = arith.constant 0 : index
    %50 = memref.load %arg1[%c1, %c0_16] : memref<3x4xf32, #tpu.memory_space<smem>>
    %51 = vector.broadcast %50 : f32 to vector<8x128xf32>
    %52 = arith.mulf %51, %34 : vector<8x128xf32>
    %c1_17 = arith.constant 1 : index
    %c0_18 = arith.constant 0 : index
    %53 = memref.load %arg2[%c1_17, %c0_18] : memref<3x4xf32, #tpu.memory_space<smem>>
    %54 = vector.broadcast %53 : f32 to vector<8x128xf32>
    %55 = arith.mulf %54, %35 : vector<8x128xf32>
    %56 = arith.subf %52, %55 : vector<8x128xf32>
    %57 = arith.mulf %54, %34 : vector<8x128xf32>
    %58 = arith.mulf %51, %35 : vector<8x128xf32>
    %59 = arith.addf %57, %58 : vector<8x128xf32>
    %60 = arith.mulf %51, %36 : vector<8x128xf32>
    %61 = arith.mulf %54, %37 : vector<8x128xf32>
    %62 = arith.addf %60, %61 : vector<8x128xf32>
    %63 = arith.mulf %54, %36 : vector<8x128xf32>
    %64 = arith.mulf %51, %37 : vector<8x128xf32>
    %65 = arith.subf %63, %64 : vector<8x128xf32>
    %66 = arith.mulf %51, %38 : vector<8x128xf32>
    %67 = arith.mulf %54, %39 : vector<8x128xf32>
    %68 = arith.subf %66, %67 : vector<8x128xf32>
    %69 = arith.mulf %54, %38 : vector<8x128xf32>
    %70 = arith.mulf %51, %39 : vector<8x128xf32>
    %71 = arith.addf %69, %70 : vector<8x128xf32>
    %c1_19 = arith.constant 1 : index
    %c0_20 = arith.constant 0 : index
    %72 = memref.load %arg1[%c1_19, %c0_20] : memref<3x4xf32, #tpu.memory_space<smem>>
    %cst = arith.constant 0.000000e+00 : f32
    %73 = arith.subf %cst, %72 : f32
    %74 = vector.broadcast %73 : f32 to vector<8x128xf32>
    %75 = arith.mulf %74, %40 : vector<8x128xf32>
    %76 = arith.mulf %54, %41 : vector<8x128xf32>
    %77 = arith.subf %75, %76 : vector<8x128xf32>
    %78 = arith.mulf %51, %41 : vector<8x128xf32>
    %79 = arith.mulf %54, %40 : vector<8x128xf32>
    %80 = arith.subf %78, %79 : vector<8x128xf32>
    %81 = arith.mulf %51, %42 : vector<8x128xf32>
    %82 = arith.mulf %54, %43 : vector<8x128xf32>
    %83 = arith.subf %81, %82 : vector<8x128xf32>
    %84 = arith.mulf %54, %42 : vector<8x128xf32>
    %85 = arith.mulf %51, %43 : vector<8x128xf32>
    %86 = arith.addf %84, %85 : vector<8x128xf32>
    %87 = arith.mulf %51, %44 : vector<8x128xf32>
    %88 = arith.mulf %54, %45 : vector<8x128xf32>
    %89 = arith.addf %87, %88 : vector<8x128xf32>
    %90 = arith.mulf %54, %44 : vector<8x128xf32>
    %91 = arith.mulf %51, %45 : vector<8x128xf32>
    %92 = arith.subf %90, %91 : vector<8x128xf32>
    %93 = arith.mulf %54, %47 : vector<8x128xf32>
    %94 = arith.mulf %51, %46 : vector<8x128xf32>
    %95 = arith.subf %93, %94 : vector<8x128xf32>
    %c1_21 = arith.constant 1 : index
    %c0_22 = arith.constant 0 : index
    %96 = memref.load %arg2[%c1_21, %c0_22] : memref<3x4xf32, #tpu.memory_space<smem>>
    %cst_23 = arith.constant 0.000000e+00 : f32
    %97 = arith.subf %cst_23, %96 : f32
    %98 = vector.broadcast %97 : f32 to vector<8x128xf32>
    %99 = arith.mulf %98, %46 : vector<8x128xf32>
    %100 = arith.mulf %51, %47 : vector<8x128xf32>
    %101 = arith.subf %99, %100 : vector<8x128xf32>
    %102 = arith.mulf %51, %48 : vector<8x128xf32>
    %103 = arith.mulf %54, %49 : vector<8x128xf32>
    %104 = arith.addf %102, %103 : vector<8x128xf32>
    %105 = arith.mulf %54, %48 : vector<8x128xf32>
    %106 = arith.mulf %51, %49 : vector<8x128xf32>
    %107 = arith.subf %105, %106 : vector<8x128xf32>
    %c1_24 = arith.constant 1 : index
    %c1_25 = arith.constant 1 : index
    %108 = memref.load %arg1[%c1_24, %c1_25] : memref<3x4xf32, #tpu.memory_space<smem>>
    %109 = vector.broadcast %108 : f32 to vector<8x128xf32>
    %110 = arith.mulf %109, %56 : vector<8x128xf32>
    %c1_26 = arith.constant 1 : index
    %c1_27 = arith.constant 1 : index
    %111 = memref.load %arg2[%c1_26, %c1_27] : memref<3x4xf32, #tpu.memory_space<smem>>
    %112 = vector.broadcast %111 : f32 to vector<8x128xf32>
    %113 = arith.mulf %112, %62 : vector<8x128xf32>
    %114 = arith.subf %110, %113 : vector<8x128xf32>
    %115 = arith.mulf %112, %56 : vector<8x128xf32>
    %116 = arith.mulf %109, %62 : vector<8x128xf32>
    %117 = arith.addf %115, %116 : vector<8x128xf32>
    %118 = arith.mulf %109, %59 : vector<8x128xf32>
    %119 = arith.mulf %112, %65 : vector<8x128xf32>
    %120 = arith.subf %118, %119 : vector<8x128xf32>
    %121 = arith.mulf %112, %59 : vector<8x128xf32>
    %122 = arith.mulf %109, %65 : vector<8x128xf32>
    %123 = arith.addf %121, %122 : vector<8x128xf32>
    %124 = arith.mulf %109, %68 : vector<8x128xf32>
    %125 = arith.mulf %112, %77 : vector<8x128xf32>
    %126 = arith.subf %124, %125 : vector<8x128xf32>
    %127 = arith.mulf %112, %68 : vector<8x128xf32>
    %128 = arith.mulf %109, %77 : vector<8x128xf32>
    %129 = arith.addf %127, %128 : vector<8x128xf32>
    %130 = arith.mulf %109, %71 : vector<8x128xf32>
    %131 = arith.mulf %112, %80 : vector<8x128xf32>
    %132 = arith.subf %130, %131 : vector<8x128xf32>
    %133 = arith.mulf %112, %71 : vector<8x128xf32>
    %134 = arith.mulf %109, %80 : vector<8x128xf32>
    %135 = arith.addf %133, %134 : vector<8x128xf32>
    %136 = arith.mulf %109, %83 : vector<8x128xf32>
    %137 = arith.mulf %112, %89 : vector<8x128xf32>
    %138 = arith.subf %136, %137 : vector<8x128xf32>
    %139 = arith.mulf %112, %83 : vector<8x128xf32>
    %140 = arith.mulf %109, %89 : vector<8x128xf32>
    %141 = arith.addf %139, %140 : vector<8x128xf32>
    %142 = arith.mulf %109, %86 : vector<8x128xf32>
    %143 = arith.mulf %112, %92 : vector<8x128xf32>
    %144 = arith.subf %142, %143 : vector<8x128xf32>
    %145 = arith.mulf %112, %86 : vector<8x128xf32>
    %146 = arith.mulf %109, %92 : vector<8x128xf32>
    %147 = arith.addf %145, %146 : vector<8x128xf32>
    %148 = arith.mulf %109, %95 : vector<8x128xf32>
    %149 = arith.mulf %112, %104 : vector<8x128xf32>
    %150 = arith.subf %148, %149 : vector<8x128xf32>
    %151 = arith.mulf %112, %95 : vector<8x128xf32>
    %152 = arith.mulf %109, %104 : vector<8x128xf32>
    %153 = arith.addf %151, %152 : vector<8x128xf32>
    %154 = arith.mulf %109, %101 : vector<8x128xf32>
    %155 = arith.mulf %112, %107 : vector<8x128xf32>
    %156 = arith.subf %154, %155 : vector<8x128xf32>
    %157 = arith.mulf %112, %101 : vector<8x128xf32>
    %158 = arith.mulf %109, %107 : vector<8x128xf32>
    %159 = arith.addf %157, %158 : vector<8x128xf32>
    %c1_28 = arith.constant 1 : index
    %c2 = arith.constant 2 : index
    %160 = memref.load %arg1[%c1_28, %c2] : memref<3x4xf32, #tpu.memory_space<smem>>
    %161 = vector.broadcast %160 : f32 to vector<8x128xf32>
    %162 = arith.mulf %161, %114 : vector<8x128xf32>
    %c1_29 = arith.constant 1 : index
    %c2_30 = arith.constant 2 : index
    %163 = memref.load %arg2[%c1_29, %c2_30] : memref<3x4xf32, #tpu.memory_space<smem>>
    %164 = vector.broadcast %163 : f32 to vector<8x128xf32>
    %165 = arith.mulf %164, %126 : vector<8x128xf32>
    %166 = arith.subf %162, %165 : vector<8x128xf32>
    %167 = arith.mulf %164, %114 : vector<8x128xf32>
    %168 = arith.mulf %161, %126 : vector<8x128xf32>
    %169 = arith.addf %167, %168 : vector<8x128xf32>
    %170 = arith.mulf %161, %120 : vector<8x128xf32>
    %171 = arith.mulf %164, %132 : vector<8x128xf32>
    %172 = arith.subf %170, %171 : vector<8x128xf32>
    %173 = arith.mulf %164, %120 : vector<8x128xf32>
    %174 = arith.mulf %161, %132 : vector<8x128xf32>
    %175 = arith.addf %173, %174 : vector<8x128xf32>
    %176 = arith.mulf %161, %117 : vector<8x128xf32>
    %177 = arith.mulf %164, %129 : vector<8x128xf32>
    %178 = arith.subf %176, %177 : vector<8x128xf32>
    %179 = arith.mulf %164, %117 : vector<8x128xf32>
    %180 = arith.mulf %161, %129 : vector<8x128xf32>
    %181 = arith.addf %179, %180 : vector<8x128xf32>
    %182 = arith.mulf %161, %123 : vector<8x128xf32>
    %183 = arith.mulf %164, %135 : vector<8x128xf32>
    %184 = arith.subf %182, %183 : vector<8x128xf32>
    %185 = arith.mulf %164, %123 : vector<8x128xf32>
    %186 = arith.mulf %161, %135 : vector<8x128xf32>
    %187 = arith.addf %185, %186 : vector<8x128xf32>
    %188 = arith.mulf %161, %138 : vector<8x128xf32>
    %189 = arith.mulf %164, %150 : vector<8x128xf32>
    %190 = arith.subf %188, %189 : vector<8x128xf32>
    %191 = arith.mulf %164, %138 : vector<8x128xf32>
    %192 = arith.mulf %161, %150 : vector<8x128xf32>
    %193 = arith.addf %191, %192 : vector<8x128xf32>
    %194 = arith.mulf %161, %144 : vector<8x128xf32>
    %195 = arith.mulf %164, %156 : vector<8x128xf32>
    %196 = arith.subf %194, %195 : vector<8x128xf32>
    %197 = arith.mulf %164, %144 : vector<8x128xf32>
    %198 = arith.mulf %161, %156 : vector<8x128xf32>
    %199 = arith.addf %197, %198 : vector<8x128xf32>
    %200 = arith.mulf %161, %141 : vector<8x128xf32>
    %201 = arith.mulf %164, %153 : vector<8x128xf32>
    %202 = arith.subf %200, %201 : vector<8x128xf32>
    %203 = arith.mulf %164, %141 : vector<8x128xf32>
    %204 = arith.mulf %161, %153 : vector<8x128xf32>
    %205 = arith.addf %203, %204 : vector<8x128xf32>
    %206 = arith.mulf %161, %147 : vector<8x128xf32>
    %207 = arith.mulf %164, %159 : vector<8x128xf32>
    %208 = arith.subf %206, %207 : vector<8x128xf32>
    %209 = arith.mulf %164, %147 : vector<8x128xf32>
    %210 = arith.mulf %161, %159 : vector<8x128xf32>
    %211 = arith.addf %209, %210 : vector<8x128xf32>
    %c1_31 = arith.constant 1 : index
    %c3 = arith.constant 3 : index
    %212 = memref.load %arg1[%c1_31, %c3] : memref<3x4xf32, #tpu.memory_space<smem>>
    %213 = vector.broadcast %212 : f32 to vector<8x128xf32>
    %214 = arith.mulf %213, %166 : vector<8x128xf32>
    %c1_32 = arith.constant 1 : index
    %c3_33 = arith.constant 3 : index
    %215 = memref.load %arg2[%c1_32, %c3_33] : memref<3x4xf32, #tpu.memory_space<smem>>
    %216 = vector.broadcast %215 : f32 to vector<8x128xf32>
    %217 = arith.mulf %216, %190 : vector<8x128xf32>
    %218 = arith.subf %214, %217 : vector<8x128xf32>
    %219 = arith.mulf %216, %166 : vector<8x128xf32>
    %220 = arith.mulf %213, %190 : vector<8x128xf32>
    %221 = arith.addf %219, %220 : vector<8x128xf32>
    %222 = arith.mulf %213, %172 : vector<8x128xf32>
    %223 = arith.mulf %216, %196 : vector<8x128xf32>
    %224 = arith.subf %222, %223 : vector<8x128xf32>
    %225 = arith.mulf %216, %172 : vector<8x128xf32>
    %226 = arith.mulf %213, %196 : vector<8x128xf32>
    %227 = arith.addf %225, %226 : vector<8x128xf32>
    %228 = arith.mulf %213, %178 : vector<8x128xf32>
    %229 = arith.mulf %216, %202 : vector<8x128xf32>
    %230 = arith.subf %228, %229 : vector<8x128xf32>
    %231 = arith.mulf %216, %178 : vector<8x128xf32>
    %232 = arith.mulf %213, %202 : vector<8x128xf32>
    %233 = arith.addf %231, %232 : vector<8x128xf32>
    %234 = arith.mulf %213, %184 : vector<8x128xf32>
    %235 = arith.mulf %216, %208 : vector<8x128xf32>
    %236 = arith.subf %234, %235 : vector<8x128xf32>
    %237 = arith.mulf %216, %184 : vector<8x128xf32>
    %238 = arith.mulf %213, %208 : vector<8x128xf32>
    %239 = arith.addf %237, %238 : vector<8x128xf32>
    %240 = arith.mulf %213, %169 : vector<8x128xf32>
    %241 = arith.mulf %216, %193 : vector<8x128xf32>
    %242 = arith.subf %240, %241 : vector<8x128xf32>
    %243 = arith.mulf %216, %169 : vector<8x128xf32>
    %244 = arith.mulf %213, %193 : vector<8x128xf32>
    %245 = arith.addf %243, %244 : vector<8x128xf32>
    %246 = arith.mulf %213, %175 : vector<8x128xf32>
    %247 = arith.mulf %216, %199 : vector<8x128xf32>
    %248 = arith.subf %246, %247 : vector<8x128xf32>
    %249 = arith.mulf %216, %175 : vector<8x128xf32>
    %250 = arith.mulf %213, %199 : vector<8x128xf32>
    %251 = arith.addf %249, %250 : vector<8x128xf32>
    %252 = arith.mulf %213, %181 : vector<8x128xf32>
    %253 = arith.mulf %216, %205 : vector<8x128xf32>
    %254 = arith.subf %252, %253 : vector<8x128xf32>
    %255 = arith.mulf %216, %181 : vector<8x128xf32>
    %256 = arith.mulf %213, %205 : vector<8x128xf32>
    %257 = arith.addf %255, %256 : vector<8x128xf32>
    %258 = arith.mulf %213, %187 : vector<8x128xf32>
    %259 = arith.mulf %216, %211 : vector<8x128xf32>
    %260 = arith.subf %258, %259 : vector<8x128xf32>
    %261 = arith.mulf %216, %187 : vector<8x128xf32>
    %262 = arith.mulf %213, %211 : vector<8x128xf32>
    %263 = arith.addf %261, %262 : vector<8x128xf32>
    %c2_34 = arith.constant 2 : index
    %c0_35 = arith.constant 0 : index
    %264 = memref.load %arg1[%c2_34, %c0_35] : memref<3x4xf32, #tpu.memory_space<smem>>
    %265 = vector.broadcast %264 : f32 to vector<8x128xf32>
    %266 = arith.mulf %265, %218 : vector<8x128xf32>
    %c2_36 = arith.constant 2 : index
    %c0_37 = arith.constant 0 : index
    %267 = memref.load %arg2[%c2_36, %c0_37] : memref<3x4xf32, #tpu.memory_space<smem>>
    %268 = vector.broadcast %267 : f32 to vector<8x128xf32>
    %269 = arith.mulf %268, %224 : vector<8x128xf32>
    %270 = arith.subf %266, %269 : vector<8x128xf32>
    %271 = arith.mulf %268, %218 : vector<8x128xf32>
    %272 = arith.mulf %265, %224 : vector<8x128xf32>
    %273 = arith.addf %271, %272 : vector<8x128xf32>
    %274 = arith.mulf %265, %230 : vector<8x128xf32>
    %275 = arith.mulf %268, %236 : vector<8x128xf32>
    %276 = arith.addf %274, %275 : vector<8x128xf32>
    %277 = arith.mulf %268, %230 : vector<8x128xf32>
    %278 = arith.mulf %265, %236 : vector<8x128xf32>
    %279 = arith.subf %277, %278 : vector<8x128xf32>
    %280 = arith.mulf %265, %242 : vector<8x128xf32>
    %281 = arith.mulf %268, %248 : vector<8x128xf32>
    %282 = arith.subf %280, %281 : vector<8x128xf32>
    %283 = arith.mulf %268, %242 : vector<8x128xf32>
    %284 = arith.mulf %265, %248 : vector<8x128xf32>
    %285 = arith.addf %283, %284 : vector<8x128xf32>
    %c2_38 = arith.constant 2 : index
    %c0_39 = arith.constant 0 : index
    %286 = memref.load %arg1[%c2_38, %c0_39] : memref<3x4xf32, #tpu.memory_space<smem>>
    %cst_40 = arith.constant 0.000000e+00 : f32
    %287 = arith.subf %cst_40, %286 : f32
    %288 = vector.broadcast %287 : f32 to vector<8x128xf32>
    %289 = arith.mulf %288, %254 : vector<8x128xf32>
    %290 = arith.mulf %268, %260 : vector<8x128xf32>
    %291 = arith.subf %289, %290 : vector<8x128xf32>
    %292 = arith.mulf %265, %260 : vector<8x128xf32>
    %293 = arith.mulf %268, %254 : vector<8x128xf32>
    %294 = arith.subf %292, %293 : vector<8x128xf32>
    %295 = arith.mulf %265, %221 : vector<8x128xf32>
    %296 = arith.mulf %268, %227 : vector<8x128xf32>
    %297 = arith.subf %295, %296 : vector<8x128xf32>
    %298 = arith.mulf %268, %221 : vector<8x128xf32>
    %299 = arith.mulf %265, %227 : vector<8x128xf32>
    %300 = arith.addf %298, %299 : vector<8x128xf32>
    %301 = arith.mulf %265, %233 : vector<8x128xf32>
    %302 = arith.mulf %268, %239 : vector<8x128xf32>
    %303 = arith.addf %301, %302 : vector<8x128xf32>
    %304 = arith.mulf %268, %233 : vector<8x128xf32>
    %305 = arith.mulf %265, %239 : vector<8x128xf32>
    %306 = arith.subf %304, %305 : vector<8x128xf32>
    %307 = arith.mulf %268, %251 : vector<8x128xf32>
    %308 = arith.mulf %265, %245 : vector<8x128xf32>
    %309 = arith.subf %307, %308 : vector<8x128xf32>
    %c2_41 = arith.constant 2 : index
    %c0_42 = arith.constant 0 : index
    %310 = memref.load %arg2[%c2_41, %c0_42] : memref<3x4xf32, #tpu.memory_space<smem>>
    %cst_43 = arith.constant 0.000000e+00 : f32
    %311 = arith.subf %cst_43, %310 : f32
    %312 = vector.broadcast %311 : f32 to vector<8x128xf32>
    %313 = arith.mulf %312, %245 : vector<8x128xf32>
    %314 = arith.mulf %265, %251 : vector<8x128xf32>
    %315 = arith.subf %313, %314 : vector<8x128xf32>
    %316 = arith.mulf %265, %257 : vector<8x128xf32>
    %317 = arith.mulf %268, %263 : vector<8x128xf32>
    %318 = arith.addf %316, %317 : vector<8x128xf32>
    %319 = arith.mulf %268, %257 : vector<8x128xf32>
    %320 = arith.mulf %265, %263 : vector<8x128xf32>
    %321 = arith.subf %319, %320 : vector<8x128xf32>
    %c2_44 = arith.constant 2 : index
    %c1_45 = arith.constant 1 : index
    %322 = memref.load %arg1[%c2_44, %c1_45] : memref<3x4xf32, #tpu.memory_space<smem>>
    %323 = vector.broadcast %322 : f32 to vector<8x128xf32>
    %324 = arith.mulf %323, %270 : vector<8x128xf32>
    %c2_46 = arith.constant 2 : index
    %c1_47 = arith.constant 1 : index
    %325 = memref.load %arg2[%c2_46, %c1_47] : memref<3x4xf32, #tpu.memory_space<smem>>
    %326 = vector.broadcast %325 : f32 to vector<8x128xf32>
    %327 = arith.mulf %326, %276 : vector<8x128xf32>
    %328 = arith.subf %324, %327 : vector<8x128xf32>
    %329 = arith.mulf %326, %270 : vector<8x128xf32>
    %330 = arith.mulf %323, %276 : vector<8x128xf32>
    %331 = arith.addf %329, %330 : vector<8x128xf32>
    %332 = arith.mulf %323, %273 : vector<8x128xf32>
    %333 = arith.mulf %326, %279 : vector<8x128xf32>
    %334 = arith.subf %332, %333 : vector<8x128xf32>
    %335 = arith.mulf %326, %273 : vector<8x128xf32>
    %336 = arith.mulf %323, %279 : vector<8x128xf32>
    %337 = arith.addf %335, %336 : vector<8x128xf32>
    %338 = arith.mulf %323, %282 : vector<8x128xf32>
    %339 = arith.mulf %326, %291 : vector<8x128xf32>
    %340 = arith.subf %338, %339 : vector<8x128xf32>
    %341 = arith.mulf %326, %282 : vector<8x128xf32>
    %342 = arith.mulf %323, %291 : vector<8x128xf32>
    %343 = arith.addf %341, %342 : vector<8x128xf32>
    %344 = arith.mulf %323, %285 : vector<8x128xf32>
    %345 = arith.mulf %326, %294 : vector<8x128xf32>
    %346 = arith.subf %344, %345 : vector<8x128xf32>
    %347 = arith.mulf %326, %285 : vector<8x128xf32>
    %348 = arith.mulf %323, %294 : vector<8x128xf32>
    %349 = arith.addf %347, %348 : vector<8x128xf32>
    %350 = arith.mulf %323, %297 : vector<8x128xf32>
    %351 = arith.mulf %326, %303 : vector<8x128xf32>
    %352 = arith.subf %350, %351 : vector<8x128xf32>
    %353 = arith.mulf %326, %297 : vector<8x128xf32>
    %354 = arith.mulf %323, %303 : vector<8x128xf32>
    %355 = arith.addf %353, %354 : vector<8x128xf32>
    %356 = arith.mulf %323, %300 : vector<8x128xf32>
    %357 = arith.mulf %326, %306 : vector<8x128xf32>
    %358 = arith.subf %356, %357 : vector<8x128xf32>
    %359 = arith.mulf %326, %300 : vector<8x128xf32>
    %360 = arith.mulf %323, %306 : vector<8x128xf32>
    %361 = arith.addf %359, %360 : vector<8x128xf32>
    %362 = arith.mulf %323, %309 : vector<8x128xf32>
    %363 = arith.mulf %326, %318 : vector<8x128xf32>
    %364 = arith.subf %362, %363 : vector<8x128xf32>
    %365 = arith.mulf %326, %309 : vector<8x128xf32>
    %366 = arith.mulf %323, %318 : vector<8x128xf32>
    %367 = arith.addf %365, %366 : vector<8x128xf32>
    %368 = arith.mulf %323, %315 : vector<8x128xf32>
    %369 = arith.mulf %326, %321 : vector<8x128xf32>
    %370 = arith.subf %368, %369 : vector<8x128xf32>
    %371 = arith.mulf %326, %315 : vector<8x128xf32>
    %372 = arith.mulf %323, %321 : vector<8x128xf32>
    %373 = arith.addf %371, %372 : vector<8x128xf32>
    %c2_48 = arith.constant 2 : index
    %c2_49 = arith.constant 2 : index
    %374 = memref.load %arg1[%c2_48, %c2_49] : memref<3x4xf32, #tpu.memory_space<smem>>
    %375 = vector.broadcast %374 : f32 to vector<8x128xf32>
    %376 = arith.mulf %375, %328 : vector<8x128xf32>
    %c2_50 = arith.constant 2 : index
    %c2_51 = arith.constant 2 : index
    %377 = memref.load %arg2[%c2_50, %c2_51] : memref<3x4xf32, #tpu.memory_space<smem>>
    %378 = vector.broadcast %377 : f32 to vector<8x128xf32>
    %379 = arith.mulf %378, %340 : vector<8x128xf32>
    %380 = arith.subf %376, %379 : vector<8x128xf32>
    %381 = arith.mulf %378, %328 : vector<8x128xf32>
    %382 = arith.mulf %375, %340 : vector<8x128xf32>
    %383 = arith.addf %381, %382 : vector<8x128xf32>
    %384 = arith.mulf %375, %334 : vector<8x128xf32>
    %385 = arith.mulf %378, %346 : vector<8x128xf32>
    %386 = arith.subf %384, %385 : vector<8x128xf32>
    %387 = arith.mulf %378, %334 : vector<8x128xf32>
    %388 = arith.mulf %375, %346 : vector<8x128xf32>
    %389 = arith.addf %387, %388 : vector<8x128xf32>
    %390 = arith.mulf %375, %331 : vector<8x128xf32>
    %391 = arith.mulf %378, %343 : vector<8x128xf32>
    %392 = arith.subf %390, %391 : vector<8x128xf32>
    %393 = arith.mulf %378, %331 : vector<8x128xf32>
    %394 = arith.mulf %375, %343 : vector<8x128xf32>
    %395 = arith.addf %393, %394 : vector<8x128xf32>
    %396 = arith.mulf %375, %337 : vector<8x128xf32>
    %397 = arith.mulf %378, %349 : vector<8x128xf32>
    %398 = arith.subf %396, %397 : vector<8x128xf32>
    %399 = arith.mulf %378, %337 : vector<8x128xf32>
    %400 = arith.mulf %375, %349 : vector<8x128xf32>
    %401 = arith.addf %399, %400 : vector<8x128xf32>
    %402 = arith.mulf %375, %352 : vector<8x128xf32>
    %403 = arith.mulf %378, %364 : vector<8x128xf32>
    %404 = arith.subf %402, %403 : vector<8x128xf32>
    %405 = arith.mulf %378, %352 : vector<8x128xf32>
    %406 = arith.mulf %375, %364 : vector<8x128xf32>
    %407 = arith.addf %405, %406 : vector<8x128xf32>
    %408 = arith.mulf %375, %358 : vector<8x128xf32>
    %409 = arith.mulf %378, %370 : vector<8x128xf32>
    %410 = arith.subf %408, %409 : vector<8x128xf32>
    %411 = arith.mulf %378, %358 : vector<8x128xf32>
    %412 = arith.mulf %375, %370 : vector<8x128xf32>
    %413 = arith.addf %411, %412 : vector<8x128xf32>
    %414 = arith.mulf %375, %355 : vector<8x128xf32>
    %415 = arith.mulf %378, %367 : vector<8x128xf32>
    %416 = arith.subf %414, %415 : vector<8x128xf32>
    %417 = arith.mulf %378, %355 : vector<8x128xf32>
    %418 = arith.mulf %375, %367 : vector<8x128xf32>
    %419 = arith.addf %417, %418 : vector<8x128xf32>
    %420 = arith.mulf %375, %361 : vector<8x128xf32>
    %421 = arith.mulf %378, %373 : vector<8x128xf32>
    %422 = arith.subf %420, %421 : vector<8x128xf32>
    %423 = arith.mulf %378, %361 : vector<8x128xf32>
    %424 = arith.mulf %375, %373 : vector<8x128xf32>
    %425 = arith.addf %423, %424 : vector<8x128xf32>
    %c2_52 = arith.constant 2 : index
    %c3_53 = arith.constant 3 : index
    %426 = memref.load %arg1[%c2_52, %c3_53] : memref<3x4xf32, #tpu.memory_space<smem>>
    %427 = vector.broadcast %426 : f32 to vector<8x128xf32>
    %428 = arith.mulf %427, %380 : vector<8x128xf32>
    %c2_54 = arith.constant 2 : index
    %c3_55 = arith.constant 3 : index
    %429 = memref.load %arg2[%c2_54, %c3_55] : memref<3x4xf32, #tpu.memory_space<smem>>
    %430 = vector.broadcast %429 : f32 to vector<8x128xf32>
    %431 = arith.mulf %430, %404 : vector<8x128xf32>
    %432 = arith.subf %428, %431 : vector<8x128xf32>
    %433 = arith.mulf %430, %380 : vector<8x128xf32>
    %434 = arith.mulf %427, %404 : vector<8x128xf32>
    %435 = arith.addf %433, %434 : vector<8x128xf32>
    %436 = arith.mulf %427, %386 : vector<8x128xf32>
    %437 = arith.mulf %430, %410 : vector<8x128xf32>
    %438 = arith.subf %436, %437 : vector<8x128xf32>
    %439 = arith.mulf %430, %386 : vector<8x128xf32>
    %440 = arith.mulf %427, %410 : vector<8x128xf32>
    %441 = arith.addf %439, %440 : vector<8x128xf32>
    %442 = arith.mulf %427, %392 : vector<8x128xf32>
    %443 = arith.mulf %430, %416 : vector<8x128xf32>
    %444 = arith.subf %442, %443 : vector<8x128xf32>
    %445 = arith.mulf %430, %392 : vector<8x128xf32>
    %446 = arith.mulf %427, %416 : vector<8x128xf32>
    %447 = arith.addf %445, %446 : vector<8x128xf32>
    %448 = arith.mulf %427, %398 : vector<8x128xf32>
    %449 = arith.mulf %430, %422 : vector<8x128xf32>
    %450 = arith.subf %448, %449 : vector<8x128xf32>
    %451 = arith.mulf %430, %398 : vector<8x128xf32>
    %452 = arith.mulf %427, %422 : vector<8x128xf32>
    %453 = arith.addf %451, %452 : vector<8x128xf32>
    %454 = arith.mulf %427, %383 : vector<8x128xf32>
    %455 = arith.mulf %430, %407 : vector<8x128xf32>
    %456 = arith.subf %454, %455 : vector<8x128xf32>
    %457 = arith.mulf %430, %383 : vector<8x128xf32>
    %458 = arith.mulf %427, %407 : vector<8x128xf32>
    %459 = arith.addf %457, %458 : vector<8x128xf32>
    %460 = arith.mulf %427, %389 : vector<8x128xf32>
    %461 = arith.mulf %430, %413 : vector<8x128xf32>
    %462 = arith.subf %460, %461 : vector<8x128xf32>
    %463 = arith.mulf %430, %389 : vector<8x128xf32>
    %464 = arith.mulf %427, %413 : vector<8x128xf32>
    %465 = arith.addf %463, %464 : vector<8x128xf32>
    %466 = arith.mulf %427, %395 : vector<8x128xf32>
    %467 = arith.mulf %430, %419 : vector<8x128xf32>
    %468 = arith.subf %466, %467 : vector<8x128xf32>
    %469 = arith.mulf %430, %395 : vector<8x128xf32>
    %470 = arith.mulf %427, %419 : vector<8x128xf32>
    %471 = arith.addf %469, %470 : vector<8x128xf32>
    %472 = arith.mulf %427, %401 : vector<8x128xf32>
    %473 = arith.mulf %430, %425 : vector<8x128xf32>
    %474 = arith.subf %472, %473 : vector<8x128xf32>
    %475 = arith.mulf %430, %401 : vector<8x128xf32>
    %476 = arith.mulf %427, %425 : vector<8x128xf32>
    %477 = arith.addf %475, %476 : vector<8x128xf32>
    %478 = arith.mulf %432, %432 : vector<8x128xf32>
    %479 = arith.mulf %438, %438 : vector<8x128xf32>
    %480 = arith.mulf %444, %444 : vector<8x128xf32>
    %481 = arith.mulf %450, %450 : vector<8x128xf32>
    %482 = arith.mulf %456, %456 : vector<8x128xf32>
    %483 = arith.mulf %462, %462 : vector<8x128xf32>
    %484 = arith.mulf %468, %468 : vector<8x128xf32>
    %485 = arith.mulf %474, %474 : vector<8x128xf32>
    %486 = arith.mulf %435, %435 : vector<8x128xf32>
    %487 = arith.mulf %441, %441 : vector<8x128xf32>
    %488 = arith.mulf %447, %447 : vector<8x128xf32>
    %489 = arith.mulf %453, %453 : vector<8x128xf32>
    %490 = arith.mulf %459, %459 : vector<8x128xf32>
    %491 = arith.mulf %465, %465 : vector<8x128xf32>
    %492 = arith.mulf %471, %471 : vector<8x128xf32>
    %493 = arith.mulf %477, %477 : vector<8x128xf32>
    %494 = arith.maximumf %478, %479 : vector<8x128xf32>
    %495 = arith.maximumf %480, %481 : vector<8x128xf32>
    %496 = arith.maximumf %482, %483 : vector<8x128xf32>
    %497 = arith.maximumf %484, %485 : vector<8x128xf32>
    %498 = arith.maximumf %486, %487 : vector<8x128xf32>
    %499 = arith.maximumf %488, %489 : vector<8x128xf32>
    %500 = arith.maximumf %490, %491 : vector<8x128xf32>
    %501 = arith.maximumf %492, %493 : vector<8x128xf32>
    %502 = arith.maximumf %494, %495 : vector<8x128xf32>
    %503 = arith.maximumf %496, %497 : vector<8x128xf32>
    %504 = arith.maximumf %498, %499 : vector<8x128xf32>
    %505 = arith.maximumf %500, %501 : vector<8x128xf32>
    %506 = arith.maximumf %502, %503 : vector<8x128xf32>
    %507 = arith.maximumf %504, %505 : vector<8x128xf32>
    %508 = arith.maximumf %506, %507 : vector<8x128xf32>
    %509 = arith.index_cast %1 : i32 to index
    %c0_56 = arith.constant 0 : index
    %c0_57 = arith.constant 0 : index
    %510 = vector.load %arg11[%509, %c0_56, %c0_57] : memref<1x8x128xf32, #tpu.memory_space<vmem>>, vector<1x8x128xf32>
    %511 = vector.shape_cast %510 : vector<1x8x128xf32> to vector<8x128xf32>
    %512 = vector.shape_cast %508 : vector<8x128xf32> to vector<1x8x128xf32>
    tpu.vector_store %arg11[%509, %c0_56, %c0_57], %512 {strides = array<i32>} : memref<1x8x128xf32, #tpu.memory_space<vmem>>, vector<1x8x128xf32>,
    %c1_i32_58 = arith.constant 1 : i32
    return
  }
  func.func @transform_0(%arg0: i32, %arg1: memref<3x4xf32, #tpu.memory_space<smem>>, %arg2: memref<3x4xf32, #tpu.memory_space<smem>>) -> (i32, i32, i32) {
    %c0_i32 = arith.constant 0 : i32
    %c0_i32_0 = arith.constant 0 : i32
    %c0_i32_1 = arith.constant 0 : i32
    return %arg0, %c0_i32, %c0_i32_0 : i32, i32, i32
  }
  func.func @transform_1(%arg0: i32, %arg1: memref<3x4xf32, #tpu.memory_space<smem>>, %arg2: memref<3x4xf32, #tpu.memory_space<smem>>) -> (i32, i32, i32) {
    %c0_i32 = arith.constant 0 : i32
    %c0_i32_0 = arith.constant 0 : i32
    %c0_i32_1 = arith.constant 0 : i32
    return %arg0, %c0_i32, %c0_i32_0 : i32, i32, i32
  }
  func.func @transform_2(%arg0: i32, %arg1: memref<3x4xf32, #tpu.memory_space<smem>>, %arg2: memref<3x4xf32, #tpu.memory_space<smem>>) -> (i32, i32, i32) {
    %c0_i32 = arith.constant 0 : i32
    %c0_i32_0 = arith.constant 0 : i32
    %c0_i32_1 = arith.constant 0 : i32
    return %arg0, %c0_i32, %c0_i32_0 : i32, i32, i32
  }
  func.func @transform_3(%arg0: i32, %arg1: memref<3x4xf32, #tpu.memory_space<smem>>, %arg2: memref<3x4xf32, #tpu.memory_space<smem>>) -> (i32, i32, i32) {
    %c0_i32 = arith.constant 0 : i32
    %c0_i32_0 = arith.constant 0 : i32
    %c0_i32_1 = arith.constant 0 : i32
    return %arg0, %c0_i32, %c0_i32_0 : i32, i32, i32
  }
  func.func @transform_4(%arg0: i32, %arg1: memref<3x4xf32, #tpu.memory_space<smem>>, %arg2: memref<3x4xf32, #tpu.memory_space<smem>>) -> (i32, i32, i32) {
    %c0_i32 = arith.constant 0 : i32
    %c0_i32_0 = arith.constant 0 : i32
    %c0_i32_1 = arith.constant 0 : i32
    return %arg0, %c0_i32, %c0_i32_0 : i32, i32, i32
  }
  func.func @transform_5(%arg0: i32, %arg1: memref<3x4xf32, #tpu.memory_space<smem>>, %arg2: memref<3x4xf32, #tpu.memory_space<smem>>) -> (i32, i32, i32) {
    %c0_i32 = arith.constant 0 : i32
    %c0_i32_0 = arith.constant 0 : i32
    %c0_i32_1 = arith.constant 0 : i32
    return %arg0, %c0_i32, %c0_i32_0 : i32, i32, i32
  }
  func.func @transform_6(%arg0: i32, %arg1: memref<3x4xf32, #tpu.memory_space<smem>>, %arg2: memref<3x4xf32, #tpu.memory_space<smem>>) -> (i32, i32, i32) {
    %c0_i32 = arith.constant 0 : i32
    %c0_i32_0 = arith.constant 0 : i32
    %c0_i32_1 = arith.constant 0 : i32
    return %arg0, %c0_i32, %c0_i32_0 : i32, i32, i32
  }
  func.func @transform_7(%arg0: i32, %arg1: memref<3x4xf32, #tpu.memory_space<smem>>, %arg2: memref<3x4xf32, #tpu.memory_space<smem>>) -> (i32, i32, i32) {
    %c0_i32 = arith.constant 0 : i32
    %c0_i32_0 = arith.constant 0 : i32
    %c0_i32_1 = arith.constant 0 : i32
    return %arg0, %c0_i32, %c0_i32_0 : i32, i32, i32
  }
  func.func @transform_8(%arg0: i32, %arg1: memref<3x4xf32, #tpu.memory_space<smem>>, %arg2: memref<3x4xf32, #tpu.memory_space<smem>>) -> (i32, i32, i32) {
    %c0_i32 = arith.constant 0 : i32
    %c0_i32_0 = arith.constant 0 : i32
    %c0_i32_1 = arith.constant 0 : i32
    return %arg0, %c0_i32, %c0_i32_0 : i32, i32, i32
  }
}

</mosaic_0001>

<llo_original>
// kernel: qsrgan_forward.1
$region0: #{qsrgan_forward.1}
  #allocation0 [shape = 'u32[]', space=smem, size = 0x4, offset = 0x4, fixed_abs, tag = 'smem constant byte address 0x4 - core index']
  #allocation1 [shape = 'u32[144,128]{1,0:T(1,128)}', space=vmem, size = 0x12000, scoped, tag = 'internal scratch']
  #allocation2 [shape = 's32[1]{0}', space=sflag, size = 0x4, scoped, tag = 'scoped memory for qsrgan_forward.1']
  #allocation3 [shape = 'u8[2048]{0}', space=smem, size = 0x800, scoped, tag = 'prefetched SMEM operand 0']
  #allocation4 [shape = 'u8[2048]{0}', space=smem, size = 0x800, scoped, tag = 'prefetched SMEM operand 1']
  %s0 = inlined_call_operand.vmem [shape: f32[3,4], index: 0, kind: input, shape index: {}]
  %s1 = inlined_call_operand.vmem [shape: f32[3,4], index: 1, kind: input, shape index: {}]
  %s2 = inlined_call_operand.vmem [shape: f32[2,8,128], index: 2, kind: input, shape index: {}]
  %s3 = inlined_call_operand.vmem [shape: f32[2,8,128], index: 3, kind: input, shape index: {}]
  %s4 = inlined_call_operand.vmem [shape: f32[2,8,128], index: 4, kind: input, shape index: {}]
  %s5 = inlined_call_operand.vmem [shape: f32[2,8,128], index: 5, kind: input, shape index: {}]
  %s6 = inlined_call_operand.vmem [shape: f32[2,8,128], index: 6, kind: input, shape index: {}]
  %s7 = inlined_call_operand.vmem [shape: f32[2,8,128], index: 7, kind: input, shape index: {}]
  %s8 = inlined_call_operand.vmem [shape: f32[2,8,128], index: 8, kind: input, shape index: {}]
  %s9 = inlined_call_operand.vmem [shape: f32[2,8,128], index: 9, kind: input, shape index: {}]
  %s10 = inlined_call_operand.vmem [shape: f32[2,8,128], index: 10, kind: output, shape index: {}]
  %s11 = sld [smem:[#allocation0]]
  $region65: #{qsrgan_forward.1} parent=0
    _
  %s13 = ssub.s32 1, %s11
  %s14 = scalar_select 0, %s13, %s11
  %s15 = sshll.u32 %s0, 4
  %s16 = int_to_ptr.vmem [resolvable:$true] %s15
  %18 = dma.vmem_to_smem %s16, 64, [#allocation3], [#allocation2]
  %s19 = sshll.u32 %s1, 4
  %s20 = int_to_ptr.vmem [resolvable:$true] %s19
  %22 = dma.vmem_to_smem %s20, 64, [#allocation4], [#allocation2]
  %23 = dma.done [#allocation2], 128
  %24 = sfence
  loop: start=0, step=1, limit=4
  $region2: #{qsrgan_forward.1} parent=0 // loop_pre_header
    _
  $region3: #{qsrgan_forward.1} parent=0 // loop_header
    %s26 = sphi 0, %s30
    %p27 = scmp.ge.s32.totalorder %s26, 4
    %s36 = sphi 0, %s38
    %s39 = sphi 0, %s36
    %s40 = sphi 0, %s39
    %s56 = sphi 0, %s40
    %s62 = sphi 0, %s64
    %s65 = sphi 0, %s62
    %s66 = sphi 0, %s65
    %s82 = sphi 0, %s66
    %s88 = sphi 0, %s90
    %s91 = sphi 0, %s88
    %s92 = sphi 0, %s91
    %s108 = sphi 0, %s92
    %s114 = sphi 0, %s116
    %s117 = sphi 0, %s114
    %s118 = sphi 0, %s117
    %s134 = sphi 0, %s118
    %s140 = sphi 0, %s142
    %s143 = sphi 0, %s140
    %s144 = sphi 0, %s143
    %s160 = sphi 0, %s144
    %s166 = sphi 0, %s168
    %s169 = sphi 0, %s166
    %s170 = sphi 0, %s169
    %s186 = sphi 0, %s170
    %s192 = sphi 0, %s194
    %s195 = sphi 0, %s192
    %s196 = sphi 0, %s195
    %s212 = sphi 0, %s196
    %s218 = sphi 0, %s220
    %s221 = sphi 0, %s218
    %s222 = sphi 0, %s221
    %s238 = sphi 0, %s222
    %s244 = sphi 0, %s246
    %s247 = sphi 0, %s244
    %s248 = sphi 0, %s247
    %s264 = sphi 0, %s248
  $region4: #{qsrgan_forward.1} parent=0 // loop_header_branch
    %29 = sbr.rel (%p27) target = $region8
  $region5: #{qsrgan_forward.1} parent=0 // loop_body
    %s31 = ssub.s32 %s26, 1
    %s32 = ssub.s32 %s26, 2
    %s33 = sadd.s32 %s26, 1
    %s34 = ssub.s32 %s26, %s33
    %p35 = scmp.eq.s32.totalorder %s34, 0
    %s37 = sadd.s32 %s36, 1
    %s38 = scalar_select %p35, %s36, %s37
    %p41 = pneg %p35
    %p42 = scmp.eq.s32.totalorder %s26, 1
    %p43 = por %p41, %p42
    %p44 = scmp.ne.s32.totalorder %s36, %s39
    %p45 = scmp.eq.s32.totalorder %s26, 0
    %p46 = por %p44, %p45
    %p47 = scmp.ne.s32.totalorder %s36, %s39
    %p48 = scmp.eq.s32.totalorder %s31, 1
    %p49 = por %p47, %p48
    %p50 = scmp.ne.s32.totalorder %s39, %s40
    %p51 = scmp.eq.s32.totalorder %s31, 0
    %p52 = por %p50, %p51
    %p53 = scmp.ne.s32.totalorder %s39, %s40
    %p54 = scmp.eq.s32.totalorder %s32, 1
    %p55 = por %p53, %p54
    %p57 = scmp.ne.s32.totalorder %s40, %s56
    %p58 = scmp.eq.s32.totalorder %s32, 0
    %p59 = por %p57, %p58
    %s60 = ssub.s32 %s26, %s33
    %p61 = scmp.eq.s32.totalorder %s60, 0
    %s63 = sadd.s32 %s62, 1
    %s64 = scalar_select %p61, %s62, %s63
    %p67 = pneg %p61
    %p68 = scmp.eq.s32.totalorder %s26, 1
    %p69 = por %p67, %p68
    %p70 = scmp.ne.s32.totalorder %s62, %s65
    %p71 = scmp.eq.s32.totalorder %s26, 0
    %p72 = por %p70, %p71
    %p73 = scmp.ne.s32.totalorder %s62, %s65
    %p74 = scmp.eq.s32.totalorder %s31, 1
    %p75 = por %p73, %p74
    %p76 = scmp.ne.s32.totalorder %s65, %s66
    %p77 = scmp.eq.s32.totalorder %s31, 0
    %p78 = por %p76, %p77
    %p79 = scmp.ne.s32.totalorder %s65, %s66
    %p80 = scmp.eq.s32.totalorder %s32, 1
    %p81 = por %p79, %p80
    %p83 = scmp.ne.s32.totalorder %s66, %s82
    %p84 = scmp.eq.s32.totalorder %s32, 0
    %p85 = por %p83, %p84
    %s86 = ssub.s32 %s26, %s33
    %p87 = scmp.eq.s32.totalorder %s86, 0
    %s89 = sadd.s32 %s88, 1
    %s90 = scalar_select %p87, %s88, %s89
    %p93 = pneg %p87
    %p94 = scmp.eq.s32.totalorder %s26, 1
    %p95 = por %p93, %p94
    %p96 = scmp.ne.s32.totalorder %s88, %s91
    %p97 = scmp.eq.s32.totalorder %s26, 0
    %p98 = por %p96, %p97
    %p99 = scmp.ne.s32.totalorder %s88, %s91
    %p100 = scmp.eq.s32.totalorder %s31, 1
    %p101 = por %p99, %p100
    %p102 = scmp.ne.s32.totalorder %s91, %s92
    %p103 = scmp.eq.s32.totalorder %s31, 0
    %p104 = por %p102, %p103
    %p105 = scmp.ne.s32.totalorder %s91, %s92
    %p106 = scmp.eq.s32.totalorder %s32, 1
    %p107 = por %p105, %p106
    %p109 = scmp.ne.s32.totalorder %s92, %s108
    %p110 = scmp.eq.s32.totalorder %s32, 0
    %p111 = por %p109, %p110
    %s112 = ssub.s32 %s26, %s33
    %p113 = scmp.eq.s32.totalorder %s112, 0
    %s115 = sadd.s32 %s114, 1
    %s116 = scalar_select %p113, %s114, %s115
    %p119 = pneg %p113
    %p120 = scmp.eq.s32.totalorder %s26, 1
    %p121 = por %p119, %p120
    %p122 = scmp.ne.s32.totalorder %s114, %s117
    %p123 = scmp.eq.s32.totalorder %s26, 0
    %p124 = por %p122, %p123
    %p125 = scmp.ne.s32.totalorder %s114, %s117
    %p126 = scmp.eq.s32.totalorder %s31, 1
    %p127 = por %p125, %p126
    %p128 = scmp.ne.s32.totalorder %s117, %s118
    %p129 = scmp.eq.s32.totalorder %s31, 0
    %p130 = por %p128, %p129
    %p131 = scmp.ne.s32.totalorder %s117, %s118
    %p132 = scmp.eq.s32.totalorder %s32, 1
    %p133 = por %p131, %p132
    %p135 = scmp.ne.s32.totalorder %s118, %s134
    %p136 = scmp.eq.s32.totalorder %s32, 0
    %p137 = por %p135, %p136
    %s138 = ssub.s32 %s26, %s33
    %p139 = scmp.eq.s32.totalorder %s138, 0
    %s141 = sadd.s32 %s140, 1
    %s142 = scalar_select %p139, %s140, %s141
    %p145 = pneg %p139
    %p146 = scmp.eq.s32.totalorder %s26, 1
    %p147 = por %p145, %p146
    %p148 = scmp.ne.s32.totalorder %s140, %s143
    %p149 = scmp.eq.s32.totalorder %s26, 0
    %p150 = por %p148, %p149
    %p151 = scmp.ne.s32.totalorder %s140, %s143
    %p152 = scmp.eq.s32.totalorder %s31, 1
    %p153 = por %p151, %p152
    %p154 = scmp.ne.s32.totalorder %s143, %s144
    %p155 = scmp.eq.s32.totalorder %s31, 0
    %p156 = por %p154, %p155
    %p157 = scmp.ne.s32.totalorder %s143, %s144
    %p158 = scmp.eq.s32.totalorder %s32, 1
    %p159 = por %p157, %p158
    %p161 = scmp.ne.s32.totalorder %s144, %s160
    %p162 = scmp.eq.s32.totalorder %s32, 0
    %p163 = por %p161, %p162
    %s164 = ssub.s32 %s26, %s33
    %p165 = scmp.eq.s32.totalorder %s164, 0
    %s167 = sadd.s32 %s166, 1
    %s168 = scalar_select %p165, %s166, %s167
    %p171 = pneg %p165
    %p172 = scmp.eq.s32.totalorder %s26, 1
    %p173 = por %p171, %p172
    %p174 = scmp.ne.s32.totalorder %s166, %s169
    %p175 = scmp.eq.s32.totalorder %s26, 0
    %p176 = por %p174, %p175
    %p177 = scmp.ne.s32.totalorder %s166, %s169
    %p178 = scmp.eq.s32.totalorder %s31, 1
    %p179 = por %p177, %p178
    %p180 = scmp.ne.s32.totalorder %s169, %s170
    %p181 = scmp.eq.s32.totalorder %s31, 0
    %p182 = por %p180, %p181
    %p183 = scmp.ne.s32.totalorder %s169, %s170
    %p184 = scmp.eq.s32.totalorder %s32, 1
    %p185 = por %p183, %p184
    %p187 = scmp.ne.s32.totalorder %s170, %s186
    %p188 = scmp.eq.s32.totalorder %s32, 0
    %p189 = por %p187, %p188
    %s190 = ssub.s32 %s26, %s33
    %p191 = scmp.eq.s32.totalorder %s190, 0
    %s193 = sadd.s32 %s192, 1
    %s194 = scalar_select %p191, %s192, %s193
    %p197 = pneg %p191
    %p198 = scmp.eq.s32.totalorder %s26, 1
    %p199 = por %p197, %p198
    %p200 = scmp.ne.s32.totalorder %s192, %s195
    %p201 = scmp.eq.s32.totalorder %s26, 0
    %p202 = por %p200, %p201
    %p203 = scmp.ne.s32.totalorder %s192, %s195
    %p204 = scmp.eq.s32.totalorder %s31, 1
    %p205 = por %p203, %p204
    %p206 = scmp.ne.s32.totalorder %s195, %s196
    %p207 = scmp.eq.s32.totalorder %s31, 0
    %p208 = por %p206, %p207
    %p209 = scmp.ne.s32.totalorder %s195, %s196
    %p210 = scmp.eq.s32.totalorder %s32, 1
    %p211 = por %p209, %p210
    %p213 = scmp.ne.s32.totalorder %s196, %s212
    %p214 = scmp.eq.s32.totalorder %s32, 0
    %p215 = por %p213, %p214
    %s216 = ssub.s32 %s26, %s33
    %p217 = scmp.eq.s32.totalorder %s216, 0
    %s219 = sadd.s32 %s218, 1
    %s220 = scalar_select %p217, %s218, %s219
    %p223 = pneg %p217
    %p224 = scmp.eq.s32.totalorder %s26, 1
    %p225 = por %p223, %p224
    %p226 = scmp.ne.s32.totalorder %s218, %s221
    %p227 = scmp.eq.s32.totalorder %s26, 0
    %p228 = por %p226, %p227
    %p229 = scmp.ne.s32.totalorder %s218, %s221
    %p230 = scmp.eq.s32.totalorder %s31, 1
    %p231 = por %p229, %p230
    %p232 = scmp.ne.s32.totalorder %s221, %s222
    %p233 = scmp.eq.s32.totalorder %s31, 0
    %p234 = por %p232, %p233
    %p235 = scmp.ne.s32.totalorder %s221, %s222
    %p236 = scmp.eq.s32.totalorder %s32, 1
    %p237 = por %p235, %p236
    %p239 = scmp.ne.s32.totalorder %s222, %s238
    %p240 = scmp.eq.s32.totalorder %s32, 0
    %p241 = por %p239, %p240
    %s242 = ssub.s32 %s26, %s33
    %p243 = scmp.eq.s32.totalorder %s242, 0
    %s245 = sadd.s32 %s244, 1
    %s246 = scalar_select %p243, %s244, %s245
    %p249 = pneg %p243
    %p250 = scmp.eq.s32.totalorder %s26, 1
    %p251 = por %p249, %p250
    %p252 = scmp.ne.s32.totalorder %s244, %s247
    %p253 = scmp.eq.s32.totalorder %s26, 0
    %p254 = por %p252, %p253
    %p255 = scmp.ne.s32.totalorder %s244, %s247
    %p256 = scmp.eq.s32.totalorder %s31, 1
    %p257 = por %p255, %p256
    %p258 = scmp.ne.s32.totalorder %s247, %s248
    %p259 = scmp.eq.s32.totalorder %s31, 0
    %p260 = por %p258, %p259
    %p261 = scmp.ne.s32.totalorder %s247, %s248
    %p262 = scmp.eq.s32.totalorder %s32, 1
    %p263 = por %p261, %p262
    %p265 = scmp.ne.s32.totalorder %s248, %s264
    %p266 = scmp.eq.s32.totalorder %s32, 0
    %p267 = por %p265, %p266
    %p268 = scmp.le.s32.totalorder 1, %s26
    %p269 = scmp.lt.s32.totalorder %s26, 3
    %p270 = pnand %p268, %p269
    %p271 = pneg %p270
    // Predicated region
    $region9: #{qsrgan_forward.1} parent=5 // pred_check
      _
    $region10: #{qsrgan_forward.1} parent=5 // pred_check_branch
      %273 = sbr.rel (%p270) target = $region12
    $region11: #{qsrgan_forward.1} parent=5 // pred_region
      %s274 = ssub.s32 %s26, 1
    $region12: #{qsrgan_forward.1} parent=5 // pred_fallthru
      _
    %p275 = scmp.lt.s32.totalorder %s26, 2
    // Predicated region
    $region13: #{qsrgan_forward.1} parent=5 // pred_check
      %p276 = pneg %p275
    $region14: #{qsrgan_forward.1} parent=5 // pred_check_branch
      %278 = sbr.rel (%p276) target = $region16
    $region15: #{qsrgan_forward.1} parent=5 // pred_region
      // Predicated region
      $region17: #{qsrgan_forward.1} parent=15 // pred_check
        %p279 = pneg %p46
      $region18: #{qsrgan_forward.1} parent=15 // pred_check_branch
        %281 = sbr.rel (%p279) target = $region20
      $region19: #{qsrgan_forward.1} parent=15 // pred_region
        %p282 = scmp.lt.s32.totalorder %s26, 1
        %s283 = scalar_select %p282, %s26, 1
        %s284 = smul.addr %s283, 8
        %s285 = scalar_lea.vmem %s2, %s284
      $region20: #{qsrgan_forward.1} parent=15 // pred_fallthru
        _
      // Predicated region
      $region21: #{qsrgan_forward.1} parent=15 // pred_check
        %p286 = pneg %p72
      $region22: #{qsrgan_forward.1} parent=15 // pred_check_branch
        %288 = sbr.rel (%p286) target = $region24
      $region23: #{qsrgan_forward.1} parent=15 // pred_region
        %p289 = scmp.lt.s32.totalorder %s26, 1
        %s290 = scalar_select %p289, %s26, 1
        %s291 = smul.addr %s290, 8
        %s292 = scalar_lea.vmem %s3, %s291
      $region24: #{qsrgan_forward.1} parent=15 // pred_fallthru
        _
      // Predicated region
      $region25: #{qsrgan_forward.1} parent=15 // pred_check
        %p293 = pneg %p98
      $region26: #{qsrgan_forward.1} parent=15 // pred_check_branch
        %295 = sbr.rel (%p293) target = $region28
      $region27: #{qsrgan_forward.1} parent=15 // pred_region
        %p296 = scmp.lt.s32.totalorder %s26, 1
        %s297 = scalar_select %p296, %s26, 1
        %s298 = smul.addr %s297, 8
        %s299 = scalar_lea.vmem %s4, %s298
      $region28: #{qsrgan_forward.1} parent=15 // pred_fallthru
        _
      // Predicated region
      $region29: #{qsrgan_forward.1} parent=15 // pred_check
        %p300 = pneg %p124
      $region30: #{qsrgan_forward.1} parent=15 // pred_check_branch
        %302 = sbr.rel (%p300) target = $region32
      $region31: #{qsrgan_forward.1} parent=15 // pred_region
        %p303 = scmp.lt.s32.totalorder %s26, 1
        %s304 = scalar_select %p303, %s26, 1
        %s305 = smul.addr %s304, 8
        %s306 = scalar_lea.vmem %s5, %s305
      $region32: #{qsrgan_forward.1} parent=15 // pred_fallthru
        _
      // Predicated region
      $region33: #{qsrgan_forward.1} parent=15 // pred_check
        %p307 = pneg %p150
      $region34: #{qsrgan_forward.1} parent=15 // pred_check_branch
        %309 = sbr.rel (%p307) target = $region36
      $region35: #{qsrgan_forward.1} parent=15 // pred_region
        %p310 = scmp.lt.s32.totalorder %s26, 1
        %s311 = scalar_select %p310, %s26, 1
        %s312 = smul.addr %s311, 8
        %s313 = scalar_lea.vmem %s6, %s312
      $region36: #{qsrgan_forward.1} parent=15 // pred_fallthru
        _
      // Predicated region
      $region37: #{qsrgan_forward.1} parent=15 // pred_check
        %p314 = pneg %p176
      $region38: #{qsrgan_forward.1} parent=15 // pred_check_branch
        %316 = sbr.rel (%p314) target = $region40
      $region39: #{qsrgan_forward.1} parent=15 // pred_region
        %p317 = scmp.lt.s32.totalorder %s26, 1
        %s318 = scalar_select %p317, %s26, 1
        %s319 = smul.addr %s318, 8
        %s320 = scalar_lea.vmem %s7, %s319
      $region40: #{qsrgan_forward.1} parent=15 // pred_fallthru
        _
      // Predicated region
      $region41: #{qsrgan_forward.1} parent=15 // pred_check
        %p321 = pneg %p202
      $region42: #{qsrgan_forward.1} parent=15 // pred_check_branch
        %323 = sbr.rel (%p321) target = $region44
      $region43: #{qsrgan_forward.1} parent=15 // pred_region
        %p324 = scmp.lt.s32.totalorder %s26, 1
        %s325 = scalar_select %p324, %s26, 1
        %s326 = smul.addr %s325, 8
        %s327 = scalar_lea.vmem %s8, %s326
      $region44: #{qsrgan_forward.1} parent=15 // pred_fallthru
        _
      // Predicated region
      $region45: #{qsrgan_forward.1} parent=15 // pred_check
        %p328 = pneg %p228
      $region46: #{qsrgan_forward.1} parent=15 // pred_check_branch
        %330 = sbr.rel (%p328) target = $region48
      $region47: #{qsrgan_forward.1} parent=15 // pred_region
        %p331 = scmp.lt.s32.totalorder %s26, 1
        %s332 = scalar_select %p331, %s26, 1
        %s333 = smul.addr %s332, 8
        %s334 = scalar_lea.vmem %s9, %s333
      $region48: #{qsrgan_forward.1} parent=15 // pred_fallthru
        _
    $region16: #{qsrgan_forward.1} parent=5 // pred_fallthru
      _
    %p335 = scmp.le.s32.totalorder 1, %s26
    %p336 = scmp.lt.s32.totalorder %s26, 3
    %p337 = pnand %p335, %p336
    %p338 = pneg %p337
    // Predicated region
    $region49: #{qsrgan_forward.1} parent=5 // pred_check
      _
    $region50: #{qsrgan_forward.1} parent=5 // pred_check_branch
      %340 = sbr.rel (%p337) target = $region52
    $region51: #{qsrgan_forward.1} parent=5 // pred_region
      %s341 = ssub.s32 %s26, 1
      %p342 = scmp.lt.s32.totalorder %s31, 1
      %s343 = scalar_select %p342, %s31, 1
      %s344 = smul.addr %s343, 8
      %s345 = scalar_lea.vmem %s2, %s344
      %p346 = pneg %p52
      %p347 = pneg %p49
      %p348 = scmp.lt.s32.totalorder %s31, 1
      %s349 = scalar_select %p348, %s31, 1
      %s350 = smul.addr %s349, 8
      %s351 = scalar_lea.vmem %s3, %s350
      %p352 = pneg %p78
      %p353 = pneg %p75
      %p354 = scmp.lt.s32.totalorder %s31, 1
      %s355 = scalar_select %p354, %s31, 1
      %s356 = smul.addr %s355, 8
      %s357 = scalar_lea.vmem %s4, %s356
      %p358 = pneg %p104
      %p359 = pneg %p101
      %p360 = scmp.lt.s32.totalorder %s31, 1
      %s361 = scalar_select %p360, %s31, 1
      %s362 = smul.addr %s361, 8
      %s363 = scalar_lea.vmem %s5, %s362
      %p364 = pneg %p130
      %p365 = pneg %p127
      %p366 = scmp.lt.s32.totalorder %s31, 1
      %s367 = scalar_select %p366, %s31, 1
      %s368 = smul.addr %s367, 8
      %s369 = scalar_lea.vmem %s6, %s368
      %p370 = pneg %p156
      %p371 = pneg %p153
      %p372 = scmp.lt.s32.totalorder %s31, 1
      %s373 = scalar_select %p372, %s31, 1
      %s374 = smul.addr %s373, 8
      %s375 = scalar_lea.vmem %s7, %s374
      %p376 = pneg %p182
      %p377 = pneg %p179
      %p378 = scmp.lt.s32.totalorder %s31, 1
      %s379 = scalar_select %p378, %s31, 1
      %s380 = smul.addr %s379, 8
      %s381 = scalar_lea.vmem %s8, %s380
      %p382 = pneg %p208
      %p383 = pneg %p205
      %p384 = scmp.lt.s32.totalorder %s31, 1
      %s385 = scalar_select %p384, %s31, 1
      %s386 = smul.addr %s385, 8
      %s387 = scalar_lea.vmem %s9, %s386
      %p388 = pneg %p234
      %p389 = pneg %p231
      %p390 = pneg %p260
      %p391 = pneg %p257
      %p392 = scmp.lt.s32.totalorder %s31, 1
      %s393 = scalar_select %p392, %s31, 1
      %s394 = smul.addr %s393, 8
      %s395 = scalar_lea.vmem %s10, %s394
      %p396 = scmp.lt.s32.totalorder %s31, 1
      %s397 = scalar_select %p396, %s31, 1
      %s398 = smul.addr %s397, 8
      %s399 = scalar_lea.vmem %s2, %s398
      %p400 = scmp.lt.s32.totalorder %s31, 1
      %s401 = scalar_select %p400, %s31, 1
      %s402 = smul.addr %s401, 8
      %s403 = scalar_lea.vmem %s3, %s402
      %p404 = scmp.lt.s32.totalorder %s31, 1
      %s405 = scalar_select %p404, %s31, 1
      %s406 = smul.addr %s405, 8
      %s407 = scalar_lea.vmem %s4, %s406
      %p408 = scmp.lt.s32.totalorder %s31, 1
      %s409 = scalar_select %p408, %s31, 1
      %s410 = smul.addr %s409, 8
      %s411 = scalar_lea.vmem %s5, %s410
      %p412 = scmp.lt.s32.totalorder %s31, 1
      %s413 = scalar_select %p412, %s31, 1
      %s414 = smul.addr %s413, 8
      %s415 = scalar_lea.vmem %s6, %s414
      %p416 = scmp.lt.s32.totalorder %s31, 1
      %s417 = scalar_select %p416, %s31, 1
      %s418 = smul.addr %s417, 8
      %s419 = scalar_lea.vmem %s7, %s418
      %p420 = scmp.lt.s32.totalorder %s31, 1
      %s421 = scalar_select %p420, %s31, 1
      %s422 = smul.addr %s421, 8
      %s423 = scalar_lea.vmem %s8, %s422
      %p424 = scmp.lt.s32.totalorder %s31, 1
      %s425 = scalar_select %p424, %s31, 1
      %s426 = smul.addr %s425, 8
      %s427 = scalar_lea.vmem %s9, %s426
      %p428 = scmp.lt.s32.totalorder %s31, 1
      %s429 = scalar_select %p428, %s31, 1
      %s430 = smul.addr %s429, 8
      %s431 = scalar_lea.vmem %s10, %s430
      %v432 = vld [vmem:[%s399] sm:$0xff]
      %v433 = vld [vmem:[%s407] sm:$0xff]
      %v434 = vld [vmem:[%s415] sm:$0xff]
      %v435 = vld [vmem:[%s423] sm:$0xff]
      %v436 = vld [vmem:[%s403] sm:$0xff]
      %v437 = vld [vmem:[%s411] sm:$0xff]
      %v438 = vld [vmem:[%s419] sm:$0xff]
      %v439 = vld [vmem:[%s427] sm:$0xff]
      %v440 = vmul.f32 %v432, %v433
      %v441 = vmul.f32 %v436, %v433
      %v442 = vmul.f32 %v432, %v437
      %v443 = vmul.f32 %v436, %v437
      %v444 = vmul.f32 %v434, %v435
      %v445 = vmul.f32 %v438, %v435
      %v446 = vmul.f32 %v434, %v439
      %v447 = vmul.f32 %v438, %v439
      %v448 = vmul.f32 %v440, %v444
      %v449 = vmul.f32 %v441, %v444
      %v450 = vmul.f32 %v442, %v444
      %v451 = vmul.f32 %v443, %v444
      %v452 = vmul.f32 %v440, %v445
      %v453 = vmul.f32 %v441, %v445
      %v454 = vmul.f32 %v442, %v445
      %v455 = vmul.f32 %v443, %v445
      %v456 = vmul.f32 %v440, %v446
      %v457 = vmul.f32 %v441, %v446
      %v458 = vmul.f32 %v442, %v446
      %v459 = vmul.f32 %v443, %v446
      %v460 = vmul.f32 %v440, %v447
      %v461 = vmul.f32 %v441, %v447
      %v462 = vmul.f32 %v442, %v447
      %v463 = vmul.f32 %v443, %v447
      %s464 = sld [smem:[#allocation3 + $0x80]]
      %v465 = vstv %s464
      %v466 = vmul.f32 %v465, %v448
      %s467 = sld [smem:[#allocation4 + $0x80]]
      %v468 = vstv %s467
      %v469 = vmul.f32 %v468, %v449
      %v470 = vsub.f32 %v466, %v469
      %v471 = vmul.f32 %v468, %v448
      %v472 = vmul.f32 %v465, %v449
      %v473 = vadd.f32 %v471, %v472
      %v474 = vmul.f32 %v465, %v450
      %v475 = vmul.f32 %v468, %v451
      %v476 = vadd.f32 %v474, %v475
      %v477 = vmul.f32 %v468, %v450
      %v478 = vmul.f32 %v465, %v451
      %v479 = vsub.f32 %v477, %v478
      %v480 = vmul.f32 %v465, %v452
      %v481 = vmul.f32 %v468, %v453
      %v482 = vsub.f32 %v480, %v481
      %v483 = vmul.f32 %v468, %v452
      %v484 = vmul.f32 %v465, %v453
      %v485 = vadd.f32 %v483, %v484
      %s486 = ssub.f32 0.0, %s464
      %v487 = vstv %s486
      %v488 = vmul.f32 %v487, %v454
      %v489 = vmul.f32 %v468, %v455
      %v490 = vsub.f32 %v488, %v489
      %v491 = vmul.f32 %v465, %v455
      %v492 = vmul.f32 %v468, %v454
      %v493 = vsub.f32 %v491, %v492
      %v494 = vmul.f32 %v465, %v456
      %v495 = vmul.f32 %v468, %v457
      %v496 = vsub.f32 %v494, %v495
      %v497 = vmul.f32 %v468, %v456
      %v498 = vmul.f32 %v465, %v457
      %v499 = vadd.f32 %v497, %v498
      %v500 = vmul.f32 %v465, %v458
      %v501 = vmul.f32 %v468, %v459
      %v502 = vadd.f32 %v500, %v501
      %v503 = vmul.f32 %v468, %v458
      %v504 = vmul.f32 %v465, %v459
      %v505 = vsub.f32 %v503, %v504
      %v506 = vmul.f32 %v468, %v461
      %v507 = vmul.f32 %v465, %v460
      %v508 = vsub.f32 %v506, %v507
      %s509 = ssub.f32 0.0, %s467
      %v510 = vstv %s509
      %v511 = vmul.f32 %v510, %v460
      %v512 = vmul.f32 %v465, %v461
      %v513 = vsub.f32 %v511, %v512
      %v514 = vmul.f32 %v465, %v462
      %v515 = vmul.f32 %v468, %v463
      %v516 = vadd.f32 %v514, %v515
      %v517 = vmul.f32 %v468, %v462
      %v518 = vmul.f32 %v465, %v463
      %v519 = vsub.f32 %v517, %v518
      %s520 = sld [smem:[#allocation3 + $0x81]]
      %v521 = vstv %s520
      %v522 = vmul.f32 %v521, %v470
      %s523 = sld [smem:[#allocation4 + $0x81]]
      %v524 = vstv %s523
      %v525 = vmul.f32 %v524, %v476
      %v526 = vsub.f32 %v522, %v525
      %v527 = vmul.f32 %v524, %v470
      %v528 = vmul.f32 %v521, %v476
      %v529 = vadd.f32 %v527, %v528
      %v530 = vmul.f32 %v521, %v473
      %v531 = vmul.f32 %v524, %v479
      %v532 = vsub.f32 %v530, %v531
      %v533 = vmul.f32 %v524, %v473
      %v534 = vmul.f32 %v521, %v479
      %v535 = vadd.f32 %v533, %v534
      %v536 = vmul.f32 %v521, %v482
      %v537 = vmul.f32 %v524, %v490
      %v538 = vsub.f32 %v536, %v537
      %v539 = vmul.f32 %v524, %v482
      %v540 = vmul.f32 %v521, %v490
      %v541 = vadd.f32 %v539, %v540
      %v542 = vmul.f32 %v521, %v485
      %v543 = vmul.f32 %v524, %v493
      %v544 = vsub.f32 %v542, %v543
      %v545 = vmul.f32 %v524, %v485
      %v546 = vmul.f32 %v521, %v493
      %v547 = vadd.f32 %v545, %v546
      %v548 = vmul.f32 %v521, %v496
      %v549 = vmul.f32 %v524, %v502
      %v550 = vsub.f32 %v548, %v549
      %v551 = vmul.f32 %v524, %v496
      %v552 = vmul.f32 %v521, %v502
      %v553 = vadd.f32 %v551, %v552
      %v554 = vmul.f32 %v521, %v499
      %v555 = vmul.f32 %v524, %v505
      %v556 = vsub.f32 %v554, %v555
      %v557 = vmul.f32 %v524, %v499
      %v558 = vmul.f32 %v521, %v505
      %v559 = vadd.f32 %v557, %v558
      %v560 = vmul.f32 %v521, %v508
      %v561 = vmul.f32 %v524, %v516
      %v562 = vsub.f32 %v560, %v561
      %v563 = vmul.f32 %v524, %v508
      %v564 = vmul.f32 %v521, %v516
      %v565 = vadd.f32 %v563, %v564
      %v566 = vmul.f32 %v521, %v513
      %v567 = vmul.f32 %v524, %v519
      %v568 = vsub.f32 %v566, %v567
      %v569 = vmul.f32 %v524, %v513
      %v570 = vmul.f32 %v521, %v519
      %v571 = vadd.f32 %v569, %v570
      %s572 = sld [smem:[#allocation3 + $0x82]]
      %v573 = vstv %s572
      %v574 = vmul.f32 %v573, %v526
      %s575 = sld [smem:[#allocation4 + $0x82]]
      %v576 = vstv %s575
      %v577 = vmul.f32 %v576, %v538
      %v578 = vsub.f32 %v574, %v577
      %v579 = vmul.f32 %v576, %v526
      %v580 = vmul.f32 %v573, %v538
      %v581 = vadd.f32 %v579, %v580
      %v582 = vmul.f32 %v573, %v532
      %v583 = vmul.f32 %v576, %v544
      %v584 = vsub.f32 %v582, %v583
      %v585 = vmul.f32 %v576, %v532
      %v586 = vmul.f32 %v573, %v544
      %v587 = vadd.f32 %v585, %v586
      %v588 = vmul.f32 %v573, %v529
      %v589 = vmul.f32 %v576, %v541
      %v590 = vsub.f32 %v588, %v589
      %v591 = vmul.f32 %v576, %v529
      %v592 = vmul.f32 %v573, %v541
      %v593 = vadd.f32 %v591, %v592
      %v594 = vmul.f32 %v573, %v535
      %v595 = vmul.f32 %v576, %v547
      %v596 = vsub.f32 %v594, %v595
      %v597 = vmul.f32 %v576, %v535
      %v598 = vmul.f32 %v573, %v547
      %v599 = vadd.f32 %v597, %v598
      %v600 = vmul.f32 %v573, %v550
      %v601 = vmul.f32 %v576, %v562
      %v602 = vsub.f32 %v600, %v601
      %v603 = vmul.f32 %v576, %v550
      %v604 = vmul.f32 %v573, %v562
      %v605 = vadd.f32 %v603, %v604
      %v606 = vmul.f32 %v573, %v556
      %v607 = vmul.f32 %v576, %v568
      %v608 = vsub.f32 %v606, %v607
      %v609 = vmul.f32 %v576, %v556
      %v610 = vmul.f32 %v573, %v568
      %v611 = vadd.f32 %v609, %v610
      %v612 = vmul.f32 %v573, %v553
      %v613 = vmul.f32 %v576, %v565
      %v614 = vsub.f32 %v612, %v613
      %v615 = vmul.f32 %v576, %v553
      %v616 = vmul.f32 %v573, %v565
      %v617 = vadd.f32 %v615, %v616
      %v618 = vmul.f32 %v573, %v559
      %v619 = vmul.f32 %v576, %v571
      %v620 = vsub.f32 %v618, %v619
      %v621 = vmul.f32 %v576, %v559
      %v622 = vmul.f32 %v573, %v571
      %v623 = vadd.f32 %v621, %v622
      %s624 = sld [smem:[#allocation3 + $0x83]]
      %v625 = vstv %s624
      %v626 = vmul.f32 %v625, %v578
      %s627 = sld [smem:[#allocation4 + $0x83]]
      %v628 = vstv %s627
      %v629 = vmul.f32 %v628, %v602
      %v630 = vsub.f32 %v626, %v629
      %v631 = vmul.f32 %v628, %v578
      %v632 = vmul.f32 %v625, %v602
      %v633 = vadd.f32 %v631, %v632
      %v634 = vmul.f32 %v625, %v584
      %v635 = vmul.f32 %v628, %v608
      %v636 = vsub.f32 %v634, %v635
      %v637 = vmul.f32 %v628, %v584
      %v638 = vmul.f32 %v625, %v608
      %v639 = vadd.f32 %v637, %v638
      %v640 = vmul.f32 %v625, %v590
      %v641 = vmul.f32 %v628, %v614
      %v642 = vsub.f32 %v640, %v641
      %v643 = vmul.f32 %v628, %v590
      %v644 = vmul.f32 %v625, %v614
      %v645 = vadd.f32 %v643, %v644
      %v646 = vmul.f32 %v625, %v596
      %v647 = vmul.f32 %v628, %v620
      %v648 = vsub.f32 %v646, %v647
      %v649 = vmul.f32 %v628, %v596
      %v650 = vmul.f32 %v625, %v620
      %v651 = vadd.f32 %v649, %v650
      %v652 = vmul.f32 %v625, %v581
      %v653 = vmul.f32 %v628, %v605
      %v654 = vsub.f32 %v652, %v653
      %v655 = vmul.f32 %v628, %v581
      %v656 = vmul.f32 %v625, %v605
      %v657 = vadd.f32 %v655, %v656
      %v658 = vmul.f32 %v625, %v587
      %v659 = vmul.f32 %v628, %v611
      %v660 = vsub.f32 %v658, %v659
      %v661 = vmul.f32 %v628, %v587
      %v662 = vmul.f32 %v625, %v611
      %v663 = vadd.f32 %v661, %v662
      %v664 = vmul.f32 %v625, %v593
      %v665 = vmul.f32 %v628, %v617
      %v666 = vsub.f32 %v664, %v665
      %v667 = vmul.f32 %v628, %v593
      %v668 = vmul.f32 %v625, %v617
      %v669 = vadd.f32 %v667, %v668
      %v670 = vmul.f32 %v625, %v599
      %v671 = vmul.f32 %v628, %v623
      %v672 = vsub.f32 %v670, %v671
      %v673 = vmul.f32 %v628, %v599
      %v674 = vmul.f32 %v625, %v623
      %v675 = vadd.f32 %v673, %v674
      %s676 = sld [smem:[#allocation3 + $0x100]]
      %v677 = vstv %s676
      %v678 = vmul.f32 %v677, %v630
      %s679 = sld [smem:[#allocation4 + $0x100]]
      %v680 = vstv %s679
      %v681 = vmul.f32 %v680, %v636
      %v682 = vsub.f32 %v678, %v681
      %v683 = vmul.f32 %v680, %v630
      %v684 = vmul.f32 %v677, %v636
      %v685 = vadd.f32 %v683, %v684
      %v686 = vmul.f32 %v677, %v642
      %v687 = vmul.f32 %v680, %v648
      %v688 = vadd.f32 %v686, %v687
      %v689 = vmul.f32 %v680, %v642
      %v690 = vmul.f32 %v677, %v648
      %v691 = vsub.f32 %v689, %v690
      %v692 = vmul.f32 %v677, %v654
      %v693 = vmul.f32 %v680, %v660
      %v694 = vsub.f32 %v692, %v693
      %v695 = vmul.f32 %v680, %v654
      %v696 = vmul.f32 %v677, %v660
      %v697 = vadd.f32 %v695, %v696
      %s698 = ssub.f32 0.0, %s676
      %v699 = vstv %s698
      %v700 = vmul.f32 %v699, %v666
      %v701 = vmul.f32 %v680, %v672
      %v702 = vsub.f32 %v700, %v701
      %v703 = vmul.f32 %v677, %v672
      %v704 = vmul.f32 %v680, %v666
      %v705 = vsub.f32 %v703, %v704
      %v706 = vmul.f32 %v677, %v633
      %v707 = vmul.f32 %v680, %v639
      %v708 = vsub.f32 %v706, %v707
      %v709 = vmul.f32 %v680, %v633
      %v710 = vmul.f32 %v677, %v639
      %v711 = vadd.f32 %v709, %v710
      %v712 = vmul.f32 %v677, %v645
      %v713 = vmul.f32 %v680, %v651
      %v714 = vadd.f32 %v712, %v713
      %v715 = vmul.f32 %v680, %v645
      %v716 = vmul.f32 %v677, %v651
      %v717 = vsub.f32 %v715, %v716
      %v718 = vmul.f32 %v680, %v663
      %v719 = vmul.f32 %v677, %v657
      %v720 = vsub.f32 %v718, %v719
      %s721 = ssub.f32 0.0, %s679
      %v722 = vstv %s721
      %v723 = vmul.f32 %v722, %v657
      %v724 = vmul.f32 %v677, %v663
      %v725 = vsub.f32 %v723, %v724
      %v726 = vmul.f32 %v677, %v669
      %v727 = vmul.f32 %v680, %v675
      %v728 = vadd.f32 %v726, %v727
      %v729 = vmul.f32 %v680, %v669
      %v730 = vmul.f32 %v677, %v675
      %v731 = vsub.f32 %v729, %v730
      %s732 = sld [smem:[#allocation3 + $0x101]]
      %v733 = vstv %s732
      %v734 = vmul.f32 %v733, %v682
      %s735 = sld [smem:[#allocation4 + $0x101]]
      %v736 = vstv %s735
      %v737 = vmul.f32 %v736, %v688
      %v738 = vsub.f32 %v734, %v737
      %v739 = vmul.f32 %v736, %v682
      %v740 = vmul.f32 %v733, %v688
      %v741 = vadd.f32 %v739, %v740
      %v742 = vmul.f32 %v733, %v685
      %v743 = vmul.f32 %v736, %v691
      %v744 = vsub.f32 %v742, %v743
      %v745 = vmul.f32 %v736, %v685
      %v746 = vmul.f32 %v733, %v691
      %v747 = vadd.f32 %v745, %v746
      %v748 = vmul.f32 %v733, %v694
      %v749 = vmul.f32 %v736, %v702
      %v750 = vsub.f32 %v748, %v749
      %v751 = vmul.f32 %v736, %v694
      %v752 = vmul.f32 %v733, %v702
      %v753 = vadd.f32 %v751, %v752
      %v754 = vmul.f32 %v733, %v697
      %v755 = vmul.f32 %v736, %v705
      %v756 = vsub.f32 %v754, %v755
      %v757 = vmul.f32 %v736, %v697
      %v758 = vmul.f32 %v733, %v705
      %v759 = vadd.f32 %v757, %v758
      %v760 = vmul.f32 %v733, %v708
      %v761 = vmul.f32 %v736, %v714
      %v762 = vsub.f32 %v760, %v761
      %v763 = vmul.f32 %v736, %v708
      %v764 = vmul.f32 %v733, %v714
      %v765 = vadd.f32 %v763, %v764
      %v766 = vmul.f32 %v733, %v711
      %v767 = vmul.f32 %v736, %v717
      %v768 = vsub.f32 %v766, %v767
      %v769 = vmul.f32 %v736, %v711
      %v770 = vmul.f32 %v733, %v717
      %v771 = vadd.f32 %v769, %v770
      %v772 = vmul.f32 %v733, %v720
      %v773 = vmul.f32 %v736, %v728
      %v774 = vsub.f32 %v772, %v773
      %v775 = vmul.f32 %v736, %v720
      %v776 = vmul.f32 %v733, %v728
      %v777 = vadd.f32 %v775, %v776
      %v778 = vmul.f32 %v733, %v725
      %v779 = vmul.f32 %v736, %v731
      %v780 = vsub.f32 %v778, %v779
      %v781 = vmul.f32 %v736, %v725
      %v782 = vmul.f32 %v733, %v731
      %v783 = vadd.f32 %v781, %v782
      %s784 = sld [smem:[#allocation3 + $0x102]]
      %v785 = vstv %s784
      %v786 = vmul.f32 %v785, %v738
      %s787 = sld [smem:[#allocation4 + $0x102]]
      %v788 = vstv %s787
      %v789 = vmul.f32 %v788, %v750
      %v790 = vsub.f32 %v786, %v789
      %v791 = vmul.f32 %v788, %v738
      %v792 = vmul.f32 %v785, %v750
      %v793 = vadd.f32 %v791, %v792
      %v794 = vmul.f32 %v785, %v744
      %v795 = vmul.f32 %v788, %v756
      %v796 = vsub.f32 %v794, %v795
      %v797 = vmul.f32 %v788, %v744
      %v798 = vmul.f32 %v785, %v756
      %v799 = vadd.f32 %v797, %v798
      %v800 = vmul.f32 %v785, %v741
      %v801 = vmul.f32 %v788, %v753
      %v802 = vsub.f32 %v800, %v801
      %v803 = vmul.f32 %v788, %v741
      %v804 = vmul.f32 %v785, %v753
      %v805 = vadd.f32 %v803, %v804
      %v806 = vmul.f32 %v785, %v747
      %v807 = vmul.f32 %v788, %v759
      %v808 = vsub.f32 %v806, %v807
      %v809 = vmul.f32 %v788, %v747
      %v810 = vmul.f32 %v785, %v759
      %v811 = vadd.f32 %v809, %v810
      %v812 = vmul.f32 %v785, %v762
      %v813 = vmul.f32 %v788, %v774
      %v814 = vsub.f32 %v812, %v813
      %v815 = vmul.f32 %v788, %v762
      %v816 = vmul.f32 %v785, %v774
      %v817 = vadd.f32 %v815, %v816
      %v818 = vmul.f32 %v785, %v768
      %v819 = vmul.f32 %v788, %v780
      %v820 = vsub.f32 %v818, %v819
      %v821 = vmul.f32 %v788, %v768
      %v822 = vmul.f32 %v785, %v780
      %v823 = vadd.f32 %v821, %v822
      %v824 = vmul.f32 %v785, %v765
      %v825 = vmul.f32 %v788, %v777
      %v826 = vsub.f32 %v824, %v825
      %v827 = vmul.f32 %v788, %v765
      %v828 = vmul.f32 %v785, %v777
      %v829 = vadd.f32 %v827, %v828
      %v830 = vmul.f32 %v785, %v771
      %v831 = vmul.f32 %v788, %v783
      %v832 = vsub.f32 %v830, %v831
      %v833 = vmul.f32 %v788, %v771
      %v834 = vmul.f32 %v785, %v783
      %v835 = vadd.f32 %v833, %v834
      %s836 = sld [smem:[#allocation3 + $0x103]]
      %v837 = vstv %s836
      %v838 = vmul.f32 %v837, %v790
      %s839 = sld [smem:[#allocation4 + $0x103]]
      %v840 = vstv %s839
      %v841 = vmul.f32 %v840, %v814
      %v842 = vsub.f32 %v838, %v841
      %v843 = vmul.f32 %v840, %v790
      %v844 = vmul.f32 %v837, %v814
      %v845 = vadd.f32 %v843, %v844
      %v846 = vmul.f32 %v837, %v796
      %v847 = vmul.f32 %v840, %v820
      %v848 = vsub.f32 %v846, %v847
      %v849 = vmul.f32 %v840, %v796
      %v850 = vmul.f32 %v837, %v820
      %v851 = vadd.f32 %v849, %v850
      %v852 = vmul.f32 %v837, %v802
      %v853 = vmul.f32 %v840, %v826
      %v854 = vsub.f32 %v852, %v853
      %v855 = vmul.f32 %v840, %v802
      %v856 = vmul.f32 %v837, %v826
      %v857 = vadd.f32 %v855, %v856
      %v858 = vmul.f32 %v837, %v808
      %v859 = vmul.f32 %v840, %v832
      %v860 = vsub.f32 %v858, %v859
      %v861 = vmul.f32 %v840, %v808
      %v862 = vmul.f32 %v837, %v832
      %v863 = vadd.f32 %v861, %v862
      %v864 = vmul.f32 %v837, %v793
      %v865 = vmul.f32 %v840, %v817
      %v866 = vsub.f32 %v864, %v865
      %v867 = vmul.f32 %v840, %v793
      %v868 = vmul.f32 %v837, %v817
      %v869 = vadd.f32 %v867, %v868
      %v870 = vmul.f32 %v837, %v799
      %v871 = vmul.f32 %v840, %v823
      %v872 = vsub.f32 %v870, %v871
      %v873 = vmul.f32 %v840, %v799
      %v874 = vmul.f32 %v837, %v823
      %v875 = vadd.f32 %v873, %v874
      %v876 = vmul.f32 %v837, %v805
      %v877 = vmul.f32 %v840, %v829
      %v878 = vsub.f32 %v876, %v877
      %v879 = vmul.f32 %v840, %v805
      %v880 = vmul.f32 %v837, %v829
      %v881 = vadd.f32 %v879, %v880
      %v882 = vmul.f32 %v837, %v811
      %v883 = vmul.f32 %v840, %v835
      %v884 = vsub.f32 %v882, %v883
      %v885 = vmul.f32 %v840, %v811
      %v886 = vmul.f32 %v837, %v835
      %v887 = vadd.f32 %v885, %v886
      %v888 = vmul.f32 %v842, %v842
      %v889 = vmul.f32 %v848, %v848
      %v890 = vmul.f32 %v854, %v854
      %v891 = vmul.f32 %v860, %v860
      %v892 = vmul.f32 %v866, %v866
      %v893 = vmul.f32 %v872, %v872
      %v894 = vmul.f32 %v878, %v878
      %v895 = vmul.f32 %v884, %v884
      %v896 = vmul.f32 %v845, %v845
      %v897 = vmul.f32 %v851, %v851
      %v898 = vmul.f32 %v857, %v857
      %v899 = vmul.f32 %v863, %v863
      %v900 = vmul.f32 %v869, %v869
      %v901 = vmul.f32 %v875, %v875
      %v902 = vmul.f32 %v881, %v881
      %v903 = vmul.f32 %v887, %v887
      %v904 = vmax.f32 %v888, %v889
      %v905 = vmax.f32 %v890, %v891
      %v906 = vmax.f32 %v892, %v893
      %v907 = vmax.f32 %v894, %v895
      %v908 = vmax.f32 %v896, %v897
      %v909 = vmax.f32 %v898, %v899
      %v910 = vmax.f32 %v900, %v901
      %v911 = vmax.f32 %v902, %v903
      %v912 = vmax.f32 %v904, %v905
      %v913 = vmax.f32 %v906, %v907
      %v914 = vmax.f32 %v908, %v909
      %v915 = vmax.f32 %v910, %v911
      %v916 = vmax.f32 %v912, %v913
      %v917 = vmax.f32 %v914, %v915
      %v918 = vmax.f32 %v916, %v917
      %919 = vst [vmem:[%s431] sm:$0xff] %v918
      %p920 = scmp.lt.s32.totalorder %s31, 1
      %s921 = scalar_select %p920, %s31, 1
      %s922 = smul.addr %s921, 8
      %s923 = scalar_lea.vmem %s10, %s922
      // Predicated region
      $region53: #{qsrgan_forward.1} parent=51 // pred_check
        %p924 = pneg %p257
      $region54: #{qsrgan_forward.1} parent=51 // pred_check_branch
        %926 = sbr.rel (%p924) target = $region56
      $region55: #{qsrgan_forward.1} parent=51 // pred_region
        _
      $region56: #{qsrgan_forward.1} parent=51 // pred_fallthru
        _
    $region52: #{qsrgan_forward.1} parent=5 // pred_fallthru
      _
    %p927 = scmp.le.s32.totalorder 2, %s26
    // Predicated region
    $region57: #{qsrgan_forward.1} parent=5 // pred_check
      %p928 = pneg %p927
    $region58: #{qsrgan_forward.1} parent=5 // pred_check_branch
      %930 = sbr.rel (%p928) target = $region60
    $region59: #{qsrgan_forward.1} parent=5 // pred_region
      %s931 = ssub.s32 %s26, 2
      // Predicated region
      $region61: #{qsrgan_forward.1} parent=59 // pred_check
        %p932 = pneg %p263
      $region62: #{qsrgan_forward.1} parent=59 // pred_check_branch
        %934 = sbr.rel (%p932) target = $region64
      $region63: #{qsrgan_forward.1} parent=59 // pred_region
        %p935 = scmp.lt.s32.totalorder %s32, 1
        %s936 = scalar_select %p935, %s32, 1
        %s937 = smul.addr %s936, 8
        %s938 = scalar_lea.vmem %s10, %s937
      $region64: #{qsrgan_forward.1} parent=59 // pred_fallthru
        _
    $region60: #{qsrgan_forward.1} parent=5 // pred_fallthru
      _
  $region6: #{qsrgan_forward.1} parent=0 // loop_footer
    %s30 = sadd.s32 1, %s26
  $region7: #{qsrgan_forward.1} parent=0 // loop_footer_branch
    %25 = sbr.rel target = $region3
  $region8: #{qsrgan_forward.1} parent=0 // loop_exit
    _

</llo_original>
